<compile_context>
chip_gen: v7x
topology: tpu7x:2x2x1
jax: 0.10.0
libtpu: 0.0.40
codegen_flags: <defaults>
</compile_context>

<pallas_src>
import functools

import jax
import jax.numpy as jnp
from jax.experimental import pallas as pl
from jax.experimental.pallas import tpu as pltpu

IN_FEATURES = 128   # adapter feature dim (lane-dense choice for the example)
HIDDEN = 1024       # matches the PyTorch spec exactly: nn.Linear(d, 1024)
N_BLOCKS = 2        # cfg['TRAINER']['COOP']['N_BLOCKS']
BATCH = 8


# ============================ Pallas kernel ===============================

def _adapter_kernel(num_blocks, *refs):
    """Fused VisualFeatureAdapter: num_blocks residual MLP blocks in one kernel.

    refs = (x_ref, [w1, b1, w2, b2] * num_blocks, o_ref)
    Weights are bf16 (MXU operands); biases/activations/residuals are f32.
    """
    x_ref = refs[0]
    o_ref = refs[-1]
    w_refs = refs[1:-1]

    x = x_ref[...].astype(jnp.float32)               # (B, D) f32 residual stream
    for i in range(num_blocks):
        w1, b1, w2, b2 = w_refs[4 * i:4 * i + 4]
        # ResidualBlock: x + Linear(ReLU(Linear(x)))
        h = jnp.dot(x.astype(jnp.bfloat16), w1[...],          # bf16 in, f32 acc
                    preferred_element_type=jnp.float32)
        h = jnp.maximum(h + b1[...], 0.0)                      # bias + ReLU in f32
        y = jnp.dot(h.astype(jnp.bfloat16), w2[...],
                    preferred_element_type=jnp.float32)
        x = x + y + b2[...]                                    # residual in f32
    o_ref[...] = x.astype(o_ref.dtype)


# ============================== wrapper ===================================

def visual_feature_adapter(x, blocks):
    """x: (B, D) f32; blocks: list of dicts with w1 (D,H) bf16, b1 (1,H) f32,
    w2 (H,D) bf16, b2 (1,D) f32.  Returns (B, D) f32."""
    B, D = x.shape
    H = blocks[0]["w1"].shape[1]
    num_blocks = len(blocks)

    flat_args = []
    in_specs = [pl.BlockSpec((B, D), lambda i: (0, 0))]
    for blk in blocks:
        flat_args += [blk["w1"], blk["b1"], blk["w2"], blk["b2"]]
        in_specs += [pl.BlockSpec((D, H), lambda i: (0, 0)),
                     pl.BlockSpec((1, H), lambda i: (0, 0)),
                     pl.BlockSpec((H, D), lambda i: (0, 0)),
                     pl.BlockSpec((1, D), lambda i: (0, 0))]

    return pl.pallas_call(
        functools.partial(_adapter_kernel, num_blocks),
        out_shape=jax.ShapeDtypeStruct((B, D), jnp.float32),
        grid=(1,),
        in_specs=in_specs,
        out_specs=pl.BlockSpec((B, D), lambda i: (0, 0)),
        compiler_params=pltpu.CompilerParams(
            dimension_semantics=("arbitrary",)),
    )(x.astype(jnp.float32), *flat_args)


# =========================== parameter init ===============================

def init_adapter_params(key, in_features, hidden, num_blocks):
    # PyTorch init: nn.init.normal_(weight, std=0.02), bias = 0.
    # Weights are stored pre-cast to bf16 (MXU dtype); biases pre-shaped (1, N) f32.
    keys = jax.random.split(key, 2 * num_blocks)
    blocks = []
    for i in range(num_blocks):
        w1 = jax.random.normal(keys[2 * i], (in_features, hidden), jnp.float32) * 0.02
        w2 = jax.random.normal(keys[2 * i + 1], (hidden, in_features), jnp.float32) * 0.02
        blocks.append(dict(
            w1=w1.astype(jnp.bfloat16),
            b1=jnp.zeros((1, hidden), jnp.float32),
            w2=w2.astype(jnp.bfloat16),
            b2=jnp.zeros((1, in_features), jnp.float32),
        ))
    return blocks


def adapter_reference(x, blocks):
    # Pure-JAX reference (f32 math, same stored weights) for a tolerance check.
    x = x.astype(jnp.float32)
    for blk in blocks:
        h = jnp.maximum(x @ blk["w1"].astype(jnp.float32) + blk["b1"][0], 0.0)
        x = x + h @ blk["w2"].astype(jnp.float32) + blk["b2"][0]
    return x


# ================================ main ====================================

if __name__ == "__main__":
    root = jax.random.PRNGKey(0)
    k_x, k_w = jax.random.split(root)

    blocks = init_adapter_params(k_w, IN_FEATURES, HIDDEN, N_BLOCKS)
    x = jax.random.normal(k_x, (BATCH, IN_FEATURES), jnp.float32)

    fwd = jax.jit(visual_feature_adapter)
    out = jax.block_until_ready(fwd(x, blocks))

    ref = adapter_reference(x, blocks)
    assert out.shape == (BATCH, IN_FEATURES)
    assert bool(jnp.all(jnp.isfinite(out)))
    # bf16 MXU operands vs f32 reference -> loose tolerance
    assert bool(jnp.allclose(out, ref, atol=1e-2, rtol=1e-2))
    print("KERNEL_OK")
</pallas_src>

<mosaic_0001>
module attributes {stable_mosaic.version = 11 : i64} {
  func.func @_adapter_kernel(%arg0: i32, %arg1: memref<8x128xf32, #tpu.memory_space<vmem>>, %arg2: memref<128x1024xbf16, #tpu.memory_space<vmem>>, %arg3: memref<1x1024xf32, #tpu.memory_space<vmem>>, %arg4: memref<1024x128xbf16, #tpu.memory_space<vmem>>, %arg5: memref<1x128xf32, #tpu.memory_space<vmem>>, %arg6: memref<128x1024xbf16, #tpu.memory_space<vmem>>, %arg7: memref<1x1024xf32, #tpu.memory_space<vmem>>, %arg8: memref<1024x128xbf16, #tpu.memory_space<vmem>>, %arg9: memref<1x128xf32, #tpu.memory_space<vmem>>, %arg10: memref<8x128xf32, #tpu.memory_space<vmem>>) attributes {dimension_semantics = [#tpu.dimension_semantics<arbitrary>], iteration_bounds = array<i64: 1>, scalar_prefetch = 0 : i64, scratch_operands = 0 : i64, tpu.core_type = #tpu.core_type<tc>, window_params = [{pipeline_mode = #tpu.pipeline_mode<synchronous>, transform_indices = @transform_0, window_bounds = array<i64: 8, 128>}, {pipeline_mode = #tpu.pipeline_mode<synchronous>, transform_indices = @transform_1, window_bounds = array<i64: 128, 1024>}, {pipeline_mode = #tpu.pipeline_mode<synchronous>, transform_indices = @transform_2, window_bounds = array<i64: 1, 1024>}, {pipeline_mode = #tpu.pipeline_mode<synchronous>, transform_indices = @transform_3, window_bounds = array<i64: 1024, 128>}, {pipeline_mode = #tpu.pipeline_mode<synchronous>, transform_indices = @transform_4, window_bounds = array<i64: 1, 128>}, {pipeline_mode = #tpu.pipeline_mode<synchronous>, transform_indices = @transform_5, window_bounds = array<i64: 128, 1024>}, {pipeline_mode = #tpu.pipeline_mode<synchronous>, transform_indices = @transform_6, window_bounds = array<i64: 1, 1024>}, {pipeline_mode = #tpu.pipeline_mode<synchronous>, transform_indices = @transform_7, window_bounds = array<i64: 1024, 128>}, {pipeline_mode = #tpu.pipeline_mode<synchronous>, transform_indices = @transform_8, window_bounds = array<i64: 1, 128>}, {pipeline_mode = #tpu.pipeline_mode<synchronous>, transform_indices = @transform_9, window_bounds = array<i64: 8, 128>}]} {
    %c0 = arith.constant 0 : index
    %c0_0 = arith.constant 0 : index
    %0 = vector.load %arg1[%c0, %c0_0] : memref<8x128xf32, #tpu.memory_space<vmem>>, vector<8x128xf32>
    %1 = arith.truncf %0 : vector<8x128xf32> to vector<8x128xbf16>
    %c0_1 = arith.constant 0 : index
    %c0_2 = arith.constant 0 : index
    %2 = vector.load %arg2[%c0_1, %c0_2] : memref<128x1024xbf16, #tpu.memory_space<vmem>>, vector<128x1024xbf16>
    %cst = arith.constant dense<0.000000e+00> : vector<8x1024xf32>
    %3 = tpu.matmul %1, %2, %cst {dimension_numbers = #tpu.dot_dimension_numbers<[1], [0], [0], [1], [0, 0, 1, 1], [], []>} : vector<8x128xbf16>, vector<128x1024xbf16>, vector<8x1024xf32> -> vector<8x1024xf32>
    %c0_3 = arith.constant 0 : index
    %c0_4 = arith.constant 0 : index
    %4 = vector.load %arg3[%c0_3, %c0_4] : memref<1x1024xf32, #tpu.memory_space<vmem>>, vector<1x1024xf32>
    %5 = vector.broadcast %4 : vector<1x1024xf32> to vector<8x1024xf32>
    %6 = arith.addf %3, %5 : vector<8x1024xf32>
    %cst_5 = arith.constant 0.000000e+00 : f32
    %7 = vector.broadcast %cst_5 : f32 to vector<8x1024xf32>
    %8 = arith.maximumf %6, %7 : vector<8x1024xf32>
    %9 = arith.truncf %8 : vector<8x1024xf32> to vector<8x1024xbf16>
    %c0_6 = arith.constant 0 : index
    %c0_7 = arith.constant 0 : index
    %10 = vector.load %arg4[%c0_6, %c0_7] : memref<1024x128xbf16, #tpu.memory_space<vmem>>, vector<1024x128xbf16>
    %cst_8 = arith.constant dense<0.000000e+00> : vector<8x128xf32>
    %11 = tpu.matmul %9, %10, %cst_8 {dimension_numbers = #tpu.dot_dimension_numbers<[1], [0], [0], [1], [0, 0, 1, 1], [], []>} : vector<8x1024xbf16>, vector<1024x128xbf16>, vector<8x128xf32> -> vector<8x128xf32>
    %12 = arith.addf %0, %11 : vector<8x128xf32>
    %c0_9 = arith.constant 0 : index
    %c0_10 = arith.constant 0 : index
    %13 = vector.load %arg5[%c0_9, %c0_10] : memref<1x128xf32, #tpu.memory_space<vmem>>, vector<1x128xf32>
    %14 = vector.broadcast %13 : vector<1x128xf32> to vector<8x128xf32>
    %15 = arith.addf %12, %14 : vector<8x128xf32>
    %16 = arith.truncf %15 : vector<8x128xf32> to vector<8x128xbf16>
    %c0_11 = arith.constant 0 : index
    %c0_12 = arith.constant 0 : index
    %17 = vector.load %arg6[%c0_11, %c0_12] : memref<128x1024xbf16, #tpu.memory_space<vmem>>, vector<128x1024xbf16>
    %cst_13 = arith.constant dense<0.000000e+00> : vector<8x1024xf32>
    %18 = tpu.matmul %16, %17, %cst_13 {dimension_numbers = #tpu.dot_dimension_numbers<[1], [0], [0], [1], [0, 0, 1, 1], [], []>} : vector<8x128xbf16>, vector<128x1024xbf16>, vector<8x1024xf32> -> vector<8x1024xf32>
    %c0_14 = arith.constant 0 : index
    %c0_15 = arith.constant 0 : index
    %19 = vector.load %arg7[%c0_14, %c0_15] : memref<1x1024xf32, #tpu.memory_space<vmem>>, vector<1x1024xf32>
    %20 = vector.broadcast %19 : vector<1x1024xf32> to vector<8x1024xf32>
    %21 = arith.addf %18, %20 : vector<8x1024xf32>
    %cst_16 = arith.constant 0.000000e+00 : f32
    %22 = vector.broadcast %cst_16 : f32 to vector<8x1024xf32>
    %23 = arith.maximumf %21, %22 : vector<8x1024xf32>
    %24 = arith.truncf %23 : vector<8x1024xf32> to vector<8x1024xbf16>
    %c0_17 = arith.constant 0 : index
    %c0_18 = arith.constant 0 : index
    %25 = vector.load %arg8[%c0_17, %c0_18] : memref<1024x128xbf16, #tpu.memory_space<vmem>>, vector<1024x128xbf16>
    %cst_19 = arith.constant dense<0.000000e+00> : vector<8x128xf32>
    %26 = tpu.matmul %24, %25, %cst_19 {dimension_numbers = #tpu.dot_dimension_numbers<[1], [0], [0], [1], [0, 0, 1, 1], [], []>} : vector<8x1024xbf16>, vector<1024x128xbf16>, vector<8x128xf32> -> vector<8x128xf32>
    %27 = arith.addf %15, %26 : vector<8x128xf32>
    %c0_20 = arith.constant 0 : index
    %c0_21 = arith.constant 0 : index
    %28 = vector.load %arg9[%c0_20, %c0_21] : memref<1x128xf32, #tpu.memory_space<vmem>>, vector<1x128xf32>
    %29 = vector.broadcast %28 : vector<1x128xf32> to vector<8x128xf32>
    %30 = arith.addf %27, %29 : vector<8x128xf32>
    %c0_22 = arith.constant 0 : index
    %c0_23 = arith.constant 0 : index
    %31 = vector.load %arg10[%c0_22, %c0_23] : memref<8x128xf32, #tpu.memory_space<vmem>>, vector<8x128xf32>
    tpu.vector_store %arg10[%c0_22, %c0_23], %30 {strides = array<i32>} : memref<8x128xf32, #tpu.memory_space<vmem>>, vector<8x128xf32>,
    return
  }
  func.func @transform_0(%arg0: i32) -> (i32, i32) {
    %c0_i32 = arith.constant 0 : i32
    %c0_i32_0 = arith.constant 0 : i32
    %c0_i32_1 = arith.constant 0 : i32
    return %c0_i32, %c0_i32_0 : i32, i32
  }
  func.func @transform_1(%arg0: i32) -> (i32, i32) {
    %c0_i32 = arith.constant 0 : i32
    %c0_i32_0 = arith.constant 0 : i32
    %c0_i32_1 = arith.constant 0 : i32
    return %c0_i32, %c0_i32_0 : i32, i32
  }
  func.func @transform_2(%arg0: i32) -> (i32, i32) {
    %c0_i32 = arith.constant 0 : i32
    %c0_i32_0 = arith.constant 0 : i32
    %c0_i32_1 = arith.constant 0 : i32
    return %c0_i32, %c0_i32_0 : i32, i32
  }
  func.func @transform_3(%arg0: i32) -> (i32, i32) {
    %c0_i32 = arith.constant 0 : i32
    %c0_i32_0 = arith.constant 0 : i32
    %c0_i32_1 = arith.constant 0 : i32
    return %c0_i32, %c0_i32_0 : i32, i32
  }
  func.func @transform_4(%arg0: i32) -> (i32, i32) {
    %c0_i32 = arith.constant 0 : i32
    %c0_i32_0 = arith.constant 0 : i32
    %c0_i32_1 = arith.constant 0 : i32
    return %c0_i32, %c0_i32_0 : i32, i32
  }
  func.func @transform_5(%arg0: i32) -> (i32, i32) {
    %c0_i32 = arith.constant 0 : i32
    %c0_i32_0 = arith.constant 0 : i32
    %c0_i32_1 = arith.constant 0 : i32
    return %c0_i32, %c0_i32_0 : i32, i32
  }
  func.func @transform_6(%arg0: i32) -> (i32, i32) {
    %c0_i32 = arith.constant 0 : i32
    %c0_i32_0 = arith.constant 0 : i32
    %c0_i32_1 = arith.constant 0 : i32
    return %c0_i32, %c0_i32_0 : i32, i32
  }
  func.func @transform_7(%arg0: i32) -> (i32, i32) {
    %c0_i32 = arith.constant 0 : i32
    %c0_i32_0 = arith.constant 0 : i32
    %c0_i32_1 = arith.constant 0 : i32
    return %c0_i32, %c0_i32_0 : i32, i32
  }
  func.func @transform_8(%arg0: i32) -> (i32, i32) {
    %c0_i32 = arith.constant 0 : i32
    %c0_i32_0 = arith.constant 0 : i32
    %c0_i32_1 = arith.constant 0 : i32
    return %c0_i32, %c0_i32_0 : i32, i32
  }
  func.func @transform_9(%arg0: i32) -> (i32, i32) {
    %c0_i32 = arith.constant 0 : i32
    %c0_i32_0 = arith.constant 0 : i32
    %c0_i32_1 = arith.constant 0 : i32
    return %c0_i32, %c0_i32_0 : i32, i32
  }
}

</mosaic_0001>

<llo_original>
// kernel: visual_feature_adapter.1
$region0: #{visual_feature_adapter.1}
  #allocation0 [shape = 'u32[]', space=smem, size = 0x4, offset = 0x4, fixed_abs, tag = 'smem constant byte address 0x4 - core index']
  #allocation1 [shape = 'u32[144,128]{1,0:T(1,128)}', space=vmem, size = 0x12000, scoped, tag = 'internal scratch']
  %s0 = inlined_call_operand.hbm [shape: f32[8,128], index: 0, kind: input, shape index: {}]
  %s1 = inlined_call_operand.hbm [shape: bf16[128,1024], index: 1, kind: input, shape index: {}]
  %s2 = inlined_call_operand.hbm [shape: f32[1,1024], index: 2, kind: input, shape index: {}]
  %s3 = inlined_call_operand.hbm [shape: bf16[1024,128], index: 3, kind: input, shape index: {}]
  %s4 = inlined_call_operand.vmem [shape: f32[1,128], index: 4, kind: input, shape index: {}]
  %s5 = inlined_call_operand.hbm [shape: bf16[128,1024], index: 5, kind: input, shape index: {}]
  %s6 = inlined_call_operand.vmem [shape: f32[1,1024], index: 6, kind: input, shape index: {}]
  %s7 = inlined_call_operand.hbm [shape: bf16[1024,128], index: 7, kind: input, shape index: {}]
  %s8 = inlined_call_operand.vmem [shape: f32[1,128], index: 8, kind: input, shape index: {}]
  %s9 = inlined_call_operand.hbm [shape: f32[8,128], index: 9, kind: output, shape index: {}]
  %s10 = sld [smem:[#allocation0]]
  $region70: #{visual_feature_adapter.1} parent=0
    _
  %s12 = ssub.s32 1, %s10
  %s13 = scalar_select 0, %s12, %s10
  $region1: #{visual_feature_adapter.1} parent=0
    #allocation2 [shape = 'u8[4096]{0}', space=vmem, size = 0x1000, scoped, tag = 'input window, operand 0, single buffered']
    #allocation3 [shape = 's32[1]{0}', space=sflag, size = 0x4, scoped, tag = 'scoped memory for visual_feature_adapter.1']
    #allocation4 [shape = 's32[1]{0}', space=sflag, size = 0x4, scoped, tag = 'scoped memory for visual_feature_adapter.1']
    #allocation5 [shape = 'u8[262144]{0}', space=vmem, size = 0x40000, scoped, tag = 'input window, operand 1, single buffered']
    #allocation6 [shape = 's32[1]{0}', space=sflag, size = 0x4, scoped, tag = 'scoped memory for visual_feature_adapter.1']
    #allocation7 [shape = 'u8[4096]{0}', space=vmem, size = 0x1000, scoped, tag = 'input window, operand 2, single buffered']
    #allocation8 [shape = 'u8[262144]{0}', space=vmem, size = 0x40000, scoped, tag = 'input window, operand 3, single buffered']
    #allocation9 [shape = 's32[1]{0}', space=sflag, size = 0x4, scoped, tag = 'scoped memory for visual_feature_adapter.1']
    #allocation10 [shape = 'u8[262144]{0}', space=vmem, size = 0x40000, scoped, tag = 'input window, operand 5, single buffered']
    #allocation11 [shape = 'u8[262144]{0}', space=vmem, size = 0x40000, scoped, tag = 'input window, operand 7, single buffered']
    #allocation12 [shape = 's32[1]{0}', space=sflag, size = 0x4, scoped, tag = 'scoped memory for visual_feature_adapter.1']
    #allocation13 [shape = 'u8[4096]{0}', space=vmem, size = 0x1000, scoped, tag = 'output window, operand 0, single buffered']
    %14 = vsyncpa [#allocation3], 0
    %15 = vsyncpa [#allocation6], 0
    %16 = vsyncpa [#allocation9], 0
    %17 = vsyncpa [#allocation12], 0
    %18 = vsyncpa [#allocation4], 0
    // Predicated region
    $region2: #{visual_feature_adapter.1} parent=1 // pred_check
      _
    $region3: #{visual_feature_adapter.1} parent=1 // pred_check_branch
      %20 = sbr.rel (0) target = $region5
    $region4: #{visual_feature_adapter.1} parent=1 // pred_region
      %s22 = ssub.s32 128, 128
      %23 = vsyncadd [#allocation3], %s22
      %s25 = sshll.u32 [#allocation2], 4
      %s26 = int_to_ptr.vmem [resolvable:$true] %s25
      %28 = dma.hbm_to_vmem [thread:$0]  %s0, 128, %s26, [#allocation3]
    $region5: #{visual_feature_adapter.1} parent=1 // pred_fallthru
      _
    // Predicated region
    $region6: #{visual_feature_adapter.1} parent=1 // pred_check
      _
    $region7: #{visual_feature_adapter.1} parent=1 // pred_check_branch
      %30 = sbr.rel (0) target = $region9
    $region8: #{visual_feature_adapter.1} parent=1 // pred_region
      %s32 = ssub.s32 8192, 8192
      %33 = vsyncadd [#allocation6], %s32
      %s34 = sshll.u32 [#allocation5], 4
      %s35 = int_to_ptr.vmem [resolvable:$true] %s34
      %40 = dma.hbm_to_vmem [thread:$0]  %s1, 8192, %s35, [#allocation6], 512, 512, 32
    $region9: #{visual_feature_adapter.1} parent=1 // pred_fallthru
      _
    // Predicated region
    $region10: #{visual_feature_adapter.1} parent=1 // pred_check
      _
    $region11: #{visual_feature_adapter.1} parent=1 // pred_check_branch
      %42 = sbr.rel (0) target = $region13
    $region12: #{visual_feature_adapter.1} parent=1 // pred_region
      %s44 = ssub.s32 128, 128
      %45 = vsyncadd [#allocation6], %s44
      %s47 = sshll.u32 [#allocation7], 4
      %s48 = int_to_ptr.vmem [resolvable:$true] %s47
      %50 = dma.hbm_to_vmem [thread:$0]  %s2, 128, %s48, [#allocation6]
    $region13: #{visual_feature_adapter.1} parent=1 // pred_fallthru
      _
    // Predicated region
    $region14: #{visual_feature_adapter.1} parent=1 // pred_check
      _
    $region15: #{visual_feature_adapter.1} parent=1 // pred_check_branch
      %52 = sbr.rel (0) target = $region17
    $region16: #{visual_feature_adapter.1} parent=1 // pred_region
      %s54 = ssub.s32 8192, 8192
      %55 = vsyncadd [#allocation9], %s54
      %s56 = sshll.u32 [#allocation8], 4
      %s57 = int_to_ptr.vmem [resolvable:$true] %s56
      %62 = dma.hbm_to_vmem [thread:$0]  %s3, 8192, %s57, [#allocation9], 64, 64, 4
    $region17: #{visual_feature_adapter.1} parent=1 // pred_fallthru
      _
    // Predicated region
    $region18: #{visual_feature_adapter.1} parent=1 // pred_check
      _
    $region19: #{visual_feature_adapter.1} parent=1 // pred_check_branch
      %64 = sbr.rel (0) target = $region21
    $region20: #{visual_feature_adapter.1} parent=1 // pred_region
      _
    $region21: #{visual_feature_adapter.1} parent=1 // pred_fallthru
      _
    // Predicated region
    $region22: #{visual_feature_adapter.1} parent=1 // pred_check
      _
    $region23: #{visual_feature_adapter.1} parent=1 // pred_check_branch
      %66 = sbr.rel (0) target = $region25
    $region24: #{visual_feature_adapter.1} parent=1 // pred_region
      %s68 = ssub.s32 8192, 8192
      %69 = vsyncadd [#allocation9], %s68
      %s70 = sshll.u32 [#allocation10], 4
      %s71 = int_to_ptr.vmem [resolvable:$true] %s70
      %76 = dma.hbm_to_vmem [thread:$0]  %s5, 8192, %s71, [#allocation9], 512, 512, 32
    $region25: #{visual_feature_adapter.1} parent=1 // pred_fallthru
      _
    // Predicated region
    $region26: #{visual_feature_adapter.1} parent=1 // pred_check
      _
    $region27: #{visual_feature_adapter.1} parent=1 // pred_check_branch
      %78 = sbr.rel (0) target = $region29
    $region28: #{visual_feature_adapter.1} parent=1 // pred_region
      _
    $region29: #{visual_feature_adapter.1} parent=1 // pred_fallthru
      _
    // Predicated region
    $region30: #{visual_feature_adapter.1} parent=1 // pred_check
      _
    $region31: #{visual_feature_adapter.1} parent=1 // pred_check_branch
      %80 = sbr.rel (0) target = $region33
    $region32: #{visual_feature_adapter.1} parent=1 // pred_region
      %s82 = ssub.s32 8192, 8192
      %83 = vsyncadd [#allocation12], %s82
      %s84 = sshll.u32 [#allocation11], 4
      %s85 = int_to_ptr.vmem [resolvable:$true] %s84
      %90 = dma.hbm_to_vmem [thread:$0]  %s7, 8192, %s85, [#allocation12], 64, 64, 4
    $region33: #{visual_feature_adapter.1} parent=1 // pred_fallthru
      _
    // Predicated region
    $region34: #{visual_feature_adapter.1} parent=1 // pred_check
      _
    $region35: #{visual_feature_adapter.1} parent=1 // pred_check_branch
      %92 = sbr.rel (0) target = $region37
    $region36: #{visual_feature_adapter.1} parent=1 // pred_region
      _
    $region37: #{visual_feature_adapter.1} parent=1 // pred_fallthru
      _
    // Predicated region
    $region38: #{visual_feature_adapter.1} parent=1 // pred_check
      _
    $region39: #{visual_feature_adapter.1} parent=1 // pred_check_branch
      %94 = sbr.rel (0) target = $region41
    $region40: #{visual_feature_adapter.1} parent=1 // pred_region
      %95 = dma.done [#allocation3], 128
    $region41: #{visual_feature_adapter.1} parent=1 // pred_fallthru
      _
    // Predicated region
    $region42: #{visual_feature_adapter.1} parent=1 // pred_check
      _
    $region43: #{visual_feature_adapter.1} parent=1 // pred_check_branch
      %97 = sbr.rel (0) target = $region45
    $region44: #{visual_feature_adapter.1} parent=1 // pred_region
      %98 = dma.done [#allocation6], 8192
    $region45: #{visual_feature_adapter.1} parent=1 // pred_fallthru
      _
    // Predicated region
    $region46: #{visual_feature_adapter.1} parent=1 // pred_check
      _
    $region47: #{visual_feature_adapter.1} parent=1 // pred_check_branch
      %100 = sbr.rel (0) target = $region49
    $region48: #{visual_feature_adapter.1} parent=1 // pred_region
      %101 = dma.done [#allocation6], 128
    $region49: #{visual_feature_adapter.1} parent=1 // pred_fallthru
      _
    // Predicated region
    $region50: #{visual_feature_adapter.1} parent=1 // pred_check
      _
    $region51: #{visual_feature_adapter.1} parent=1 // pred_check_branch
      %103 = sbr.rel (0) target = $region53
    $region52: #{visual_feature_adapter.1} parent=1 // pred_region
      %104 = dma.done [#allocation9], 8192
    $region53: #{visual_feature_adapter.1} parent=1 // pred_fallthru
      _
    // Predicated region
    $region54: #{visual_feature_adapter.1} parent=1 // pred_check
      _
    $region55: #{visual_feature_adapter.1} parent=1 // pred_check_branch
      %106 = sbr.rel (0) target = $region57
    $region56: #{visual_feature_adapter.1} parent=1 // pred_region
      %107 = dma.done [#allocation9], 8192
    $region57: #{visual_feature_adapter.1} parent=1 // pred_fallthru
      _
    // Predicated region
    $region58: #{visual_feature_adapter.1} parent=1 // pred_check
      _
    $region59: #{visual_feature_adapter.1} parent=1 // pred_check_branch
      %109 = sbr.rel (0) target = $region61
    $region60: #{visual_feature_adapter.1} parent=1 // pred_region
      %110 = dma.done [#allocation12], 8192
    $region61: #{visual_feature_adapter.1} parent=1 // pred_fallthru
      _
    %v112 = vld [vmem:[#allocation2] sm:$0xff]
    %v113 = vpack.c.bf16 %v112, %v112
    %v114 = vld [vmem:[#allocation5] sm:$0xff]
    %v115 = vld [vmem:[#allocation5 + $0x8] sm:$0xff]
    %v116 = vld [vmem:[#allocation5 + $0x10] sm:$0xff]
    %v117 = vld [vmem:[#allocation5 + $0x18] sm:$0xff]
    %v118 = vld [vmem:[#allocation5 + $0x20] sm:$0xff]
    %v119 = vld [vmem:[#allocation5 + $0x28] sm:$0xff]
    %v120 = vld [vmem:[#allocation5 + $0x30] sm:$0xff]
    %v121 = vld [vmem:[#allocation5 + $0x38] sm:$0xff]
    %v122 = vld [vmem:[#allocation5 + $0x40] sm:$0xff]
    %v123 = vld [vmem:[#allocation5 + $0x48] sm:$0xff]
    %v124 = vld [vmem:[#allocation5 + $0x50] sm:$0xff]
    %v125 = vld [vmem:[#allocation5 + $0x58] sm:$0xff]
    %v126 = vld [vmem:[#allocation5 + $0x60] sm:$0xff]
    %v127 = vld [vmem:[#allocation5 + $0x68] sm:$0xff]
    %v128 = vld [vmem:[#allocation5 + $0x70] sm:$0xff]
    %v129 = vld [vmem:[#allocation5 + $0x78] sm:$0xff]
    %v130 = vld [vmem:[#allocation5 + $0x80] sm:$0xff]
    %v131 = vld [vmem:[#allocation5 + $0x88] sm:$0xff]
    %v132 = vld [vmem:[#allocation5 + $0x90] sm:$0xff]
    %v133 = vld [vmem:[#allocation5 + $0x98] sm:$0xff]
    %v134 = vld [vmem:[#allocation5 + $0xa0] sm:$0xff]
    %v135 = vld [vmem:[#allocation5 + $0xa8] sm:$0xff]
    %v136 = vld [vmem:[#allocation5 + $0xb0] sm:$0xff]
    %v137 = vld [vmem:[#allocation5 + $0xb8] sm:$0xff]
    %v138 = vld [vmem:[#allocation5 + $0xc0] sm:$0xff]
    %v139 = vld [vmem:[#allocation5 + $0xc8] sm:$0xff]
    %v140 = vld [vmem:[#allocation5 + $0xd0] sm:$0xff]
    %v141 = vld [vmem:[#allocation5 + $0xd8] sm:$0xff]
    %v142 = vld [vmem:[#allocation5 + $0xe0] sm:$0xff]
    %v143 = vld [vmem:[#allocation5 + $0xe8] sm:$0xff]
    %v144 = vld [vmem:[#allocation5 + $0xf0] sm:$0xff]
    %v145 = vld [vmem:[#allocation5 + $0xf8] sm:$0xff]
    %v146 = vld [vmem:[#allocation5 + $0x100] sm:$0xff]
    %v147 = vld [vmem:[#allocation5 + $0x108] sm:$0xff]
    %v148 = vld [vmem:[#allocation5 + $0x110] sm:$0xff]
    %v149 = vld [vmem:[#allocation5 + $0x118] sm:$0xff]
    %v150 = vld [vmem:[#allocation5 + $0x120] sm:$0xff]
    %v151 = vld [vmem:[#allocation5 + $0x128] sm:$0xff]
    %v152 = vld [vmem:[#allocation5 + $0x130] sm:$0xff]
    %v153 = vld [vmem:[#allocation5 + $0x138] sm:$0xff]
    %v154 = vld [vmem:[#allocation5 + $0x140] sm:$0xff]
    %v155 = vld [vmem:[#allocation5 + $0x148] sm:$0xff]
    %v156 = vld [vmem:[#allocation5 + $0x150] sm:$0xff]
    %v157 = vld [vmem:[#allocation5 + $0x158] sm:$0xff]
    %v158 = vld [vmem:[#allocation5 + $0x160] sm:$0xff]
    %v159 = vld [vmem:[#allocation5 + $0x168] sm:$0xff]
    %v160 = vld [vmem:[#allocation5 + $0x170] sm:$0xff]
    %v161 = vld [vmem:[#allocation5 + $0x178] sm:$0xff]
    %v162 = vld [vmem:[#allocation5 + $0x180] sm:$0xff]
    %v163 = vld [vmem:[#allocation5 + $0x188] sm:$0xff]
    %v164 = vld [vmem:[#allocation5 + $0x190] sm:$0xff]
    %v165 = vld [vmem:[#allocation5 + $0x198] sm:$0xff]
    %v166 = vld [vmem:[#allocation5 + $0x1a0] sm:$0xff]
    %v167 = vld [vmem:[#allocation5 + $0x1a8] sm:$0xff]
    %v168 = vld [vmem:[#allocation5 + $0x1b0] sm:$0xff]
    %v169 = vld [vmem:[#allocation5 + $0x1b8] sm:$0xff]
    %v170 = vld [vmem:[#allocation5 + $0x1c0] sm:$0xff]
    %v171 = vld [vmem:[#allocation5 + $0x1c8] sm:$0xff]
    %v172 = vld [vmem:[#allocation5 + $0x1d0] sm:$0xff]
    %v173 = vld [vmem:[#allocation5 + $0x1d8] sm:$0xff]
    %v174 = vld [vmem:[#allocation5 + $0x1e0] sm:$0xff]
    %v175 = vld [vmem:[#allocation5 + $0x1e8] sm:$0xff]
    %v176 = vld [vmem:[#allocation5 + $0x1f0] sm:$0xff]
    %v177 = vld [vmem:[#allocation5 + $0x1f8] sm:$0xff]
    %v178 = vld [vmem:[#allocation7] sm:$0xff]
    %v180 = vlaneseq
    %v181 = vshrl.u32 %v180, 7
    %v182 = vsub.s32 0, %v181
    %v183 = vrot.slane %v178, %v182
    %v184 = vlaneseq
    %v185 = vshrl.u32 %v184, 7
    %v186 = vsub.s32 1, %v185
    %v187 = vrot.slane %v178, %v186
    %v188 = vlaneseq
    %v189 = vshrl.u32 %v188, 7
    %v190 = vsub.s32 2, %v189
    %v191 = vrot.slane %v178, %v190
    %v192 = vlaneseq
    %v193 = vshrl.u32 %v192, 7
    %v194 = vsub.s32 3, %v193
    %v195 = vrot.slane %v178, %v194
    %v196 = vlaneseq
    %v197 = vshrl.u32 %v196, 7
    %v198 = vsub.s32 4, %v197
    %v199 = vrot.slane %v178, %v198
    %v200 = vlaneseq
    %v201 = vshrl.u32 %v200, 7
    %v202 = vsub.s32 5, %v201
    %v203 = vrot.slane %v178, %v202
    %v204 = vlaneseq
    %v205 = vshrl.u32 %v204, 7
    %v206 = vsub.s32 6, %v205
    %v207 = vrot.slane %v178, %v206
    %v208 = vlaneseq
    %v209 = vshrl.u32 %v208, 7
    %v210 = vsub.s32 7, %v209
    %v211 = vrot.slane %v178, %v210
    %v284 = vunpack.c.l.b16 %v114
    %v285 = vunpack.c.h.b16 %v114
    %v286 = vunpack.c.l.b16 %v115
    %v287 = vunpack.c.h.b16 %v115
    %v288 = vunpack.c.l.b16 %v116
    %v289 = vunpack.c.h.b16 %v116
    %v290 = vunpack.c.l.b16 %v117
    %v291 = vunpack.c.h.b16 %v117
    %v292 = vunpack.c.l.b16 %v118
    %v293 = vunpack.c.h.b16 %v118
    %v294 = vunpack.c.l.b16 %v119
    %v295 = vunpack.c.h.b16 %v119
    %v296 = vunpack.c.l.b16 %v120
    %v297 = vunpack.c.h.b16 %v120
    %v298 = vunpack.c.l.b16 %v121
    %v299 = vunpack.c.h.b16 %v121
    %v300 = vunpack.c.l.b16 %v122
    %v301 = vunpack.c.h.b16 %v122
    %v302 = vunpack.c.l.b16 %v123
    %v303 = vunpack.c.h.b16 %v123
    %v304 = vunpack.c.l.b16 %v124
    %v305 = vunpack.c.h.b16 %v124
    %v306 = vunpack.c.l.b16 %v125
    %v307 = vunpack.c.h.b16 %v125
    %v308 = vunpack.c.l.b16 %v126
    %v309 = vunpack.c.h.b16 %v126
    %v310 = vunpack.c.l.b16 %v127
    %v311 = vunpack.c.h.b16 %v127
    %v312 = vunpack.c.l.b16 %v128
    %v313 = vunpack.c.h.b16 %v128
    %v314 = vunpack.c.l.b16 %v129
    %v315 = vunpack.c.h.b16 %v129
    %v316 = vunpack.c.l.b16 %v130
    %v317 = vunpack.c.h.b16 %v130
    %v318 = vunpack.c.l.b16 %v131
    %v319 = vunpack.c.h.b16 %v131
    %v320 = vunpack.c.l.b16 %v132
    %v321 = vunpack.c.h.b16 %v132
    %v322 = vunpack.c.l.b16 %v133
    %v323 = vunpack.c.h.b16 %v133
    %v324 = vunpack.c.l.b16 %v134
    %v325 = vunpack.c.h.b16 %v134
    %v326 = vunpack.c.l.b16 %v135
    %v327 = vunpack.c.h.b16 %v135
    %v328 = vunpack.c.l.b16 %v136
    %v329 = vunpack.c.h.b16 %v136
    %v330 = vunpack.c.l.b16 %v137
    %v331 = vunpack.c.h.b16 %v137
    %v332 = vunpack.c.l.b16 %v138
    %v333 = vunpack.c.h.b16 %v138
    %v334 = vunpack.c.l.b16 %v139
    %v335 = vunpack.c.h.b16 %v139
    %v336 = vunpack.c.l.b16 %v140
    %v337 = vunpack.c.h.b16 %v140
    %v338 = vunpack.c.l.b16 %v141
    %v339 = vunpack.c.h.b16 %v141
    %v340 = vunpack.c.l.b16 %v142
    %v341 = vunpack.c.h.b16 %v142
    %v342 = vunpack.c.l.b16 %v143
    %v343 = vunpack.c.h.b16 %v143
    %v344 = vunpack.c.l.b16 %v144
    %v345 = vunpack.c.h.b16 %v144
    %v346 = vunpack.c.l.b16 %v145
    %v347 = vunpack.c.h.b16 %v145
    %v348 = vunpack.c.l.b16 %v146
    %v349 = vunpack.c.h.b16 %v146
    %v350 = vunpack.c.l.b16 %v147
    %v351 = vunpack.c.h.b16 %v147
    %v352 = vunpack.c.l.b16 %v148
    %v353 = vunpack.c.h.b16 %v148
    %v354 = vunpack.c.l.b16 %v149
    %v355 = vunpack.c.h.b16 %v149
    %v356 = vunpack.c.l.b16 %v150
    %v357 = vunpack.c.h.b16 %v150
    %v358 = vunpack.c.l.b16 %v151
    %v359 = vunpack.c.h.b16 %v151
    %v360 = vunpack.c.l.b16 %v152
    %v361 = vunpack.c.h.b16 %v152
    %v362 = vunpack.c.l.b16 %v153
    %v363 = vunpack.c.h.b16 %v153
    %v364 = vunpack.c.l.b16 %v154
    %v365 = vunpack.c.h.b16 %v154
    %v366 = vunpack.c.l.b16 %v155
    %v367 = vunpack.c.h.b16 %v155
    %v368 = vunpack.c.l.b16 %v156
    %v369 = vunpack.c.h.b16 %v156
    %v370 = vunpack.c.l.b16 %v157
    %v371 = vunpack.c.h.b16 %v157
    %v372 = vunpack.c.l.b16 %v158
    %v373 = vunpack.c.h.b16 %v158
    %v374 = vunpack.c.l.b16 %v159
    %v375 = vunpack.c.h.b16 %v159
    %v376 = vunpack.c.l.b16 %v160
    %v377 = vunpack.c.h.b16 %v160
    %v378 = vunpack.c.l.b16 %v161
    %v379 = vunpack.c.h.b16 %v161
    %v380 = vunpack.c.l.b16 %v162
    %v381 = vunpack.c.h.b16 %v162
    %v382 = vunpack.c.l.b16 %v163
    %v383 = vunpack.c.h.b16 %v163
    %v384 = vunpack.c.l.b16 %v164
    %v385 = vunpack.c.h.b16 %v164
    %v386 = vunpack.c.l.b16 %v165
    %v387 = vunpack.c.h.b16 %v165
    %v388 = vunpack.c.l.b16 %v166
    %v389 = vunpack.c.h.b16 %v166
    %v390 = vunpack.c.l.b16 %v167
    %v391 = vunpack.c.h.b16 %v167
    %v392 = vunpack.c.l.b16 %v168
    %v393 = vunpack.c.h.b16 %v168
    %v394 = vunpack.c.l.b16 %v169
    %v395 = vunpack.c.h.b16 %v169
    %v396 = vunpack.c.l.b16 %v170
    %v397 = vunpack.c.h.b16 %v170
    %v398 = vunpack.c.l.b16 %v171
    %v399 = vunpack.c.h.b16 %v171
    %v400 = vunpack.c.l.b16 %v172
    %v401 = vunpack.c.h.b16 %v172
    %v402 = vunpack.c.l.b16 %v173
    %v403 = vunpack.c.h.b16 %v173
    %v404 = vunpack.c.l.b16 %v174
    %v405 = vunpack.c.h.b16 %v174
    %v406 = vunpack.c.l.b16 %v175
    %v407 = vunpack.c.h.b16 %v175
    %v408 = vunpack.c.l.b16 %v176
    %v409 = vunpack.c.h.b16 %v176
    %v410 = vunpack.c.l.b16 %v177
    %v411 = vunpack.c.h.b16 %v177
    %v412 = vpack.c.b16 %v292, %v284
    %v413 = vpack.c.b16 %v293, %v285
    %v414 = vpack.c.b16 %v294, %v286
    %v415 = vpack.c.b16 %v295, %v287
    %v416 = vpack.c.b16 %v296, %v288
    %v417 = vpack.c.b16 %v297, %v289
    %v418 = vpack.c.b16 %v298, %v290
    %v419 = vpack.c.b16 %v299, %v291
    %v420 = vpack.c.b16 %v308, %v300
    %v421 = vpack.c.b16 %v309, %v301
    %v422 = vpack.c.b16 %v310, %v302
    %v423 = vpack.c.b16 %v311, %v303
    %v424 = vpack.c.b16 %v312, %v304
    %v425 = vpack.c.b16 %v313, %v305
    %v426 = vpack.c.b16 %v314, %v306
    %v427 = vpack.c.b16 %v315, %v307
    %v428 = vpack.c.b16 %v324, %v316
    %v429 = vpack.c.b16 %v325, %v317
    %v430 = vpack.c.b16 %v326, %v318
    %v431 = vpack.c.b16 %v327, %v319
    %v432 = vpack.c.b16 %v328, %v320
    %v433 = vpack.c.b16 %v329, %v321
    %v434 = vpack.c.b16 %v330, %v322
    %v435 = vpack.c.b16 %v331, %v323
    %v436 = vpack.c.b16 %v340, %v332
    %v437 = vpack.c.b16 %v341, %v333
    %v438 = vpack.c.b16 %v342, %v334
    %v439 = vpack.c.b16 %v343, %v335
    %v440 = vpack.c.b16 %v344, %v336
    %v441 = vpack.c.b16 %v345, %v337
    %v442 = vpack.c.b16 %v346, %v338
    %v443 = vpack.c.b16 %v347, %v339
    %v444 = vpack.c.b16 %v356, %v348
    %v445 = vpack.c.b16 %v357, %v349
    %v446 = vpack.c.b16 %v358, %v350
    %v447 = vpack.c.b16 %v359, %v351
    %v448 = vpack.c.b16 %v360, %v352
    %v449 = vpack.c.b16 %v361, %v353
    %v450 = vpack.c.b16 %v362, %v354
    %v451 = vpack.c.b16 %v363, %v355
    %v452 = vpack.c.b16 %v372, %v364
    %v453 = vpack.c.b16 %v373, %v365
    %v454 = vpack.c.b16 %v374, %v366
    %v455 = vpack.c.b16 %v375, %v367
    %v456 = vpack.c.b16 %v376, %v368
    %v457 = vpack.c.b16 %v377, %v369
    %v458 = vpack.c.b16 %v378, %v370
    %v459 = vpack.c.b16 %v379, %v371
    %v460 = vpack.c.b16 %v388, %v380
    %v461 = vpack.c.b16 %v389, %v381
    %v462 = vpack.c.b16 %v390, %v382
    %v463 = vpack.c.b16 %v391, %v383
    %v464 = vpack.c.b16 %v392, %v384
    %v465 = vpack.c.b16 %v393, %v385
    %v466 = vpack.c.b16 %v394, %v386
    %v467 = vpack.c.b16 %v395, %v387
    %v468 = vpack.c.b16 %v404, %v396
    %v469 = vpack.c.b16 %v405, %v397
    %v470 = vpack.c.b16 %v406, %v398
    %v471 = vpack.c.b16 %v407, %v399
    %v472 = vpack.c.b16 %v408, %v400
    %v473 = vpack.c.b16 %v409, %v401
    %v474 = vpack.c.b16 %v410, %v402
    %v475 = vpack.c.b16 %v411, %v403
    %540 = vmatprep.subr.bf16.mxu0 %v413
    %541 = vmatpush1.bf16.msra.mxu0 %v412
    %542 = vmatprep.subr.bf16.mxu0 %v421
    %543 = vmatpush1.bf16.msra.mxu0 %v420
    %544 = vmatprep.subr.bf16.mxu0 %v429
    %545 = vmatpush1.bf16.msra.mxu0 %v428
    %546 = vmatprep.subr.bf16.mxu0 %v437
    %547 = vmatpush1.bf16.msra.mxu0 %v436
    %548 = vmatprep.subr.bf16.mxu0 %v445
    %549 = vmatpush1.bf16.msra.mxu0 %v444
    %550 = vmatprep.subr.bf16.mxu0 %v453
    %551 = vmatpush1.bf16.msra.mxu0 %v452
    %552 = vmatprep.subr.bf16.mxu0 %v461
    %553 = vmatpush1.bf16.msra.mxu0 %v460
    %554 = vmatprep.subr.bf16.mxu0 %v469
    %555 = vmatpush1.bf16.msra.mxu0 %v468
    %556 = vmatprep.subr.bf16.mxu0 0
    %557 = vmatpush1.bf16.msra.mxu0 0
    %558 = vmatprep.subr.bf16.mxu0 0
    %559 = vmatpush1.bf16.msra.mxu0 0
    %560 = vmatprep.subr.bf16.mxu0 0
    %561 = vmatpush1.bf16.msra.mxu0 0
    %562 = vmatprep.subr.bf16.mxu0 0
    %563 = vmatpush1.bf16.msra.mxu0 0
    %564 = vmatprep.subr.bf16.mxu0 0
    %565 = vmatpush1.bf16.msra.mxu0 0
    %566 = vmatprep.subr.bf16.mxu0 0
    %567 = vmatpush1.bf16.msra.mxu0 0
    %568 = vmatprep.subr.bf16.mxu0 0
    %569 = vmatpush1.bf16.msra.mxu0 0
    %570 = vmatprep.subr.bf16.mxu0 0
    %571 = vmatpush1.bf16.msra.mxu0 0
    %572 = vmatprep.mubr.bf16.mxu0 0
    %573 = vmatmul.mubr.bf16.gmra.mrb[0].mxu0 %v113
    %v574 = vpop.f32.mrb[0].mxu0
    %v575 = vadd.f32 %v183, %v574
    %v576 = vpop.f32.mrb[0].mxu0
    %v577 = vadd.f32 %v187, %v576
    %v578 = vpop.f32.mrb[0].mxu0
    %v579 = vpop.f32.mrb[0].mxu0
    %580 = vdwg.mxu0
    %581 = vmatprep.subr.bf16.mxu0 %v415
    %582 = vmatpush1.bf16.msra.mxu0 %v414
    %583 = vmatprep.subr.bf16.mxu0 %v423
    %584 = vmatpush1.bf16.msra.mxu0 %v422
    %585 = vmatprep.subr.bf16.mxu0 %v431
    %586 = vmatpush1.bf16.msra.mxu0 %v430
    %587 = vmatprep.subr.bf16.mxu0 %v439
    %588 = vmatpush1.bf16.msra.mxu0 %v438
    %589 = vmatprep.subr.bf16.mxu0 %v447
    %590 = vmatpush1.bf16.msra.mxu0 %v446
    %591 = vmatprep.subr.bf16.mxu0 %v455
    %592 = vmatpush1.bf16.msra.mxu0 %v454
    %593 = vmatprep.subr.bf16.mxu0 %v463
    %594 = vmatpush1.bf16.msra.mxu0 %v462
    %595 = vmatprep.subr.bf16.mxu0 %v471
    %596 = vmatpush1.bf16.msra.mxu0 %v470
    %597 = vmatprep.subr.bf16.mxu0 0
    %598 = vmatpush1.bf16.msra.mxu0 0
    %599 = vmatprep.subr.bf16.mxu0 0
    %600 = vmatpush1.bf16.msra.mxu0 0
    %601 = vmatprep.subr.bf16.mxu0 0
    %602 = vmatpush1.bf16.msra.mxu0 0
    %603 = vmatprep.subr.bf16.mxu0 0
    %604 = vmatpush1.bf16.msra.mxu0 0
    %605 = vmatprep.subr.bf16.mxu0 0
    %606 = vmatpush1.bf16.msra.mxu0 0
    %607 = vmatprep.subr.bf16.mxu0 0
    %608 = vmatpush1.bf16.msra.mxu0 0
    %609 = vmatprep.subr.bf16.mxu0 0
    %610 = vmatpush1.bf16.msra.mxu0 0
    %611 = vmatprep.subr.bf16.mxu0 0
    %612 = vmatpush1.bf16.msra.mxu0 0
    %613 = vmatprep.mubr.bf16.mxu0 0
    %614 = vmatmul.mubr.bf16.gmra.mrb[0].mxu0 %v113
    %v615 = vpop.f32.mrb[0].mxu0
    %v616 = vadd.f32 %v191, %v615
    %v617 = vpop.f32.mrb[0].mxu0
    %v618 = vadd.f32 %v195, %v617
    %v619 = vpop.f32.mrb[0].mxu0
    %v620 = vpop.f32.mrb[0].mxu0
    %621 = vdwg.mxu0
    %622 = vmatprep.subr.bf16.mxu0 %v417
    %623 = vmatpush1.bf16.msra.mxu0 %v416
    %624 = vmatprep.subr.bf16.mxu0 %v425
    %625 = vmatpush1.bf16.msra.mxu0 %v424
    %626 = vmatprep.subr.bf16.mxu0 %v433
    %627 = vmatpush1.bf16.msra.mxu0 %v432
    %628 = vmatprep.subr.bf16.mxu0 %v441
    %629 = vmatpush1.bf16.msra.mxu0 %v440
    %630 = vmatprep.subr.bf16.mxu0 %v449
    %631 = vmatpush1.bf16.msra.mxu0 %v448
    %632 = vmatprep.subr.bf16.mxu0 %v457
    %633 = vmatpush1.bf16.msra.mxu0 %v456
    %634 = vmatprep.subr.bf16.mxu0 %v465
    %635 = vmatpush1.bf16.msra.mxu0 %v464
    %636 = vmatprep.subr.bf16.mxu0 %v473
    %637 = vmatpush1.bf16.msra.mxu0 %v472
    %638 = vmatprep.subr.bf16.mxu0 0
    %639 = vmatpush1.bf16.msra.mxu0 0
    %640 = vmatprep.subr.bf16.mxu0 0
    %641 = vmatpush1.bf16.msra.mxu0 0
    %642 = vmatprep.subr.bf16.mxu0 0
    %643 = vmatpush1.bf16.msra.mxu0 0
    %644 = vmatprep.subr.bf16.mxu0 0
    %645 = vmatpush1.bf16.msra.mxu0 0
    %646 = vmatprep.subr.bf16.mxu0 0
    %647 = vmatpush1.bf16.msra.mxu0 0
    %648 = vmatprep.subr.bf16.mxu0 0
    %649 = vmatpush1.bf16.msra.mxu0 0
    %650 = vmatprep.subr.bf16.mxu0 0
    %651 = vmatpush1.bf16.msra.mxu0 0
    %652 = vmatprep.subr.bf16.mxu0 0
    %653 = vmatpush1.bf16.msra.mxu0 0
    %654 = vmatprep.mubr.bf16.mxu0 0
    %655 = vmatmul.mubr.bf16.gmra.mrb[0].mxu0 %v113
    %v656 = vpop.f32.mrb[0].mxu0
    %v657 = vadd.f32 %v199, %v656
    %v658 = vpop.f32.mrb[0].mxu0
    %v659 = vadd.f32 %v203, %v658
    %v660 = vpop.f32.mrb[0].mxu0
    %v661 = vpop.f32.mrb[0].mxu0
    %662 = vdwg.mxu0
    %663 = vmatprep.subr.bf16.mxu0 %v419
    %664 = vmatpush1.bf16.msra.mxu0 %v418
    %665 = vmatprep.subr.bf16.mxu0 %v427
    %666 = vmatpush1.bf16.msra.mxu0 %v426
    %667 = vmatprep.subr.bf16.mxu0 %v435
    %668 = vmatpush1.bf16.msra.mxu0 %v434
    %669 = vmatprep.subr.bf16.mxu0 %v443
    %670 = vmatpush1.bf16.msra.mxu0 %v442
    %671 = vmatprep.subr.bf16.mxu0 %v451
    %672 = vmatpush1.bf16.msra.mxu0 %v450
    %673 = vmatprep.subr.bf16.mxu0 %v459
    %674 = vmatpush1.bf16.msra.mxu0 %v458
    %675 = vmatprep.subr.bf16.mxu0 %v467
    %676 = vmatpush1.bf16.msra.mxu0 %v466
    %677 = vmatprep.subr.bf16.mxu0 %v475
    %678 = vmatpush1.bf16.msra.mxu0 %v474
    %679 = vmatprep.subr.bf16.mxu0 0
    %680 = vmatpush1.bf16.msra.mxu0 0
    %681 = vmatprep.subr.bf16.mxu0 0
    %682 = vmatpush1.bf16.msra.mxu0 0
    %683 = vmatprep.subr.bf16.mxu0 0
    %684 = vmatpush1.bf16.msra.mxu0 0
    %685 = vmatprep.subr.bf16.mxu0 0
    %686 = vmatpush1.bf16.msra.mxu0 0
    %687 = vmatprep.subr.bf16.mxu0 0
    %688 = vmatpush1.bf16.msra.mxu0 0
    %689 = vmatprep.subr.bf16.mxu0 0
    %690 = vmatpush1.bf16.msra.mxu0 0
    %691 = vmatprep.subr.bf16.mxu0 0
    %692 = vmatpush1.bf16.msra.mxu0 0
    %693 = vmatprep.subr.bf16.mxu0 0
    %694 = vmatpush1.bf16.msra.mxu0 0
    %695 = vmatprep.mubr.bf16.mxu0 0
    %696 = vmatmul.mubr.bf16.gmra.mrb[0].mxu0 %v113
    %v697 = vpop.f32.mrb[0].mxu0
    %v698 = vadd.f32 %v207, %v697
    %v699 = vpop.f32.mrb[0].mxu0
    %v700 = vadd.f32 %v211, %v699
    %v701 = vpop.f32.mrb[0].mxu0
    %v702 = vpop.f32.mrb[0].mxu0
    %703 = vdwg.mxu0
    %v704 = vmax.f32 %v575, 0.0
    %v705 = vmax.f32 %v577, 0.0
    %v706 = vmax.f32 %v616, 0.0
    %v707 = vmax.f32 %v618, 0.0
    %v708 = vmax.f32 %v657, 0.0
    %v709 = vmax.f32 %v659, 0.0
    %v710 = vmax.f32 %v698, 0.0
    %v711 = vmax.f32 %v700, 0.0
    %v712 = vpack.c.bf16 %v704, %v704
    %v713 = vpack.c.bf16 %v705, %v705
    %v714 = vpack.c.bf16 %v706, %v706
    %v715 = vpack.c.bf16 %v707, %v707
    %v716 = vpack.c.bf16 %v708, %v708
    %v717 = vpack.c.bf16 %v709, %v709
    %v718 = vpack.c.bf16 %v710, %v710
    %v719 = vpack.c.bf16 %v711, %v711
    %v720 = vld [vmem:[#allocation8] sm:$0xf]
    %v721 = vld [vmem:[#allocation8 + $0x4] sm:$0xf]
    %v722 = vld [vmem:[#allocation8 + $0x8] sm:$0xf]
    %v723 = vld [vmem:[#allocation8 + $0xc] sm:$0xf]
    %v724 = vld [vmem:[#allocation8 + $0x10] sm:$0xf]
    %v725 = vld [vmem:[#allocation8 + $0x14] sm:$0xf]
    %v726 = vld [vmem:[#allocation8 + $0x18] sm:$0xf]
    %v727 = vld [vmem:[#allocation8 + $0x1c] sm:$0xf]
    %v728 = vld [vmem:[#allocation8 + $0x20] sm:$0xf]
    %v729 = vld [vmem:[#allocation8 + $0x24] sm:$0xf]
    %v730 = vld [vmem:[#allocation8 + $0x28] sm:$0xf]
    %v731 = vld [vmem:[#allocation8 + $0x2c] sm:$0xf]
    %v732 = vld [vmem:[#allocation8 + $0x30] sm:$0xf]
    %v733 = vld [vmem:[#allocation8 + $0x34] sm:$0xf]
    %v734 = vld [vmem:[#allocation8 + $0x38] sm:$0xf]
    %v735 = vld [vmem:[#allocation8 + $0x3c] sm:$0xf]
    %v736 = vld [vmem:[#allocation8 + $0x40] sm:$0xf]
    %v737 = vld [vmem:[#allocation8 + $0x44] sm:$0xf]
    %v738 = vld [vmem:[#allocation8 + $0x48] sm:$0xf]
    %v739 = vld [vmem:[#allocation8 + $0x4c] sm:$0xf]
    %v740 = vld [vmem:[#allocation8 + $0x50] sm:$0xf]
    %v741 = vld [vmem:[#allocation8 + $0x54] sm:$0xf]
    %v742 = vld [vmem:[#allocation8 + $0x58] sm:$0xf]
    %v743 = vld [vmem:[#allocation8 + $0x5c] sm:$0xf]
    %v744 = vld [vmem:[#allocation8 + $0x60] sm:$0xf]
    %v745 = vld [vmem:[#allocation8 + $0x64] sm:$0xf]
    %v746 = vld [vmem:[#allocation8 + $0x68] sm:$0xf]
    %v747 = vld [vmem:[#allocation8 + $0x6c] sm:$0xf]
    %v748 = vld [vmem:[#allocation8 + $0x70] sm:$0xf]
    %v749 = vld [vmem:[#allocation8 + $0x74] sm:$0xf]
    %v750 = vld [vmem:[#allocation8 + $0x78] sm:$0xf]
    %v751 = vld [vmem:[#allocation8 + $0x7c] sm:$0xf]
    %v752 = vld [vmem:[#allocation8 + $0x80] sm:$0xf]
    %v753 = vld [vmem:[#allocation8 + $0x84] sm:$0xf]
    %v754 = vld [vmem:[#allocation8 + $0x88] sm:$0xf]
    %v755 = vld [vmem:[#allocation8 + $0x8c] sm:$0xf]
    %v756 = vld [vmem:[#allocation8 + $0x90] sm:$0xf]
    %v757 = vld [vmem:[#allocation8 + $0x94] sm:$0xf]
    %v758 = vld [vmem:[#allocation8 + $0x98] sm:$0xf]
    %v759 = vld [vmem:[#allocation8 + $0x9c] sm:$0xf]
    %v760 = vld [vmem:[#allocation8 + $0xa0] sm:$0xf]
    %v761 = vld [vmem:[#allocation8 + $0xa4] sm:$0xf]
    %v762 = vld [vmem:[#allocation8 + $0xa8] sm:$0xf]
    %v763 = vld [vmem:[#allocation8 + $0xac] sm:$0xf]
    %v764 = vld [vmem:[#allocation8 + $0xb0] sm:$0xf]
    %v765 = vld [vmem:[#allocation8 + $0xb4] sm:$0xf]
    %v766 = vld [vmem:[#allocation8 + $0xb8] sm:$0xf]
    %v767 = vld [vmem:[#allocation8 + $0xbc] sm:$0xf]
    %v768 = vld [vmem:[#allocation8 + $0xc0] sm:$0xf]
    %v769 = vld [vmem:[#allocation8 + $0xc4] sm:$0xf]
    %v770 = vld [vmem:[#allocation8 + $0xc8] sm:$0xf]
    %v771 = vld [vmem:[#allocation8 + $0xcc] sm:$0xf]
    %v772 = vld [vmem:[#allocation8 + $0xd0] sm:$0xf]
    %v773 = vld [vmem:[#allocation8 + $0xd4] sm:$0xf]
    %v774 = vld [vmem:[#allocation8 + $0xd8] sm:$0xf]
    %v775 = vld [vmem:[#allocation8 + $0xdc] sm:$0xf]
    %v776 = vld [vmem:[#allocation8 + $0xe0] sm:$0xf]
    %v777 = vld [vmem:[#allocation8 + $0xe4] sm:$0xf]
    %v778 = vld [vmem:[#allocation8 + $0xe8] sm:$0xf]
    %v779 = vld [vmem:[#allocation8 + $0xec] sm:$0xf]
    %v780 = vld [vmem:[#allocation8 + $0xf0] sm:$0xf]
    %v781 = vld [vmem:[#allocation8 + $0xf4] sm:$0xf]
    %v782 = vld [vmem:[#allocation8 + $0xf8] sm:$0xf]
    %v783 = vld [vmem:[#allocation8 + $0xfc] sm:$0xf]
    %v784 = vld [vmem:[#allocation8 + $0x100] sm:$0xf]
    %v785 = vld [vmem:[#allocation8 + $0x104] sm:$0xf]
    %v786 = vld [vmem:[#allocation8 + $0x108] sm:$0xf]
    %v787 = vld [vmem:[#allocation8 + $0x10c] sm:$0xf]
    %v788 = vld [vmem:[#allocation8 + $0x110] sm:$0xf]
    %v789 = vld [vmem:[#allocation8 + $0x114] sm:$0xf]
    %v790 = vld [vmem:[#allocation8 + $0x118] sm:$0xf]
    %v791 = vld [vmem:[#allocation8 + $0x11c] sm:$0xf]
    %v792 = vld [vmem:[#allocation8 + $0x120] sm:$0xf]
    %v793 = vld [vmem:[#allocation8 + $0x124] sm:$0xf]
    %v794 = vld [vmem:[#allocation8 + $0x128] sm:$0xf]
    %v795 = vld [vmem:[#allocation8 + $0x12c] sm:$0xf]
    %v796 = vld [vmem:[#allocation8 + $0x130] sm:$0xf]
    %v797 = vld [vmem:[#allocation8 + $0x134] sm:$0xf]
    %v798 = vld [vmem:[#allocation8 + $0x138] sm:$0xf]
    %v799 = vld [vmem:[#allocation8 + $0x13c] sm:$0xf]
    %v800 = vld [vmem:[#allocation8 + $0x140] sm:$0xf]
    %v801 = vld [vmem:[#allocation8 + $0x144] sm:$0xf]
    %v802 = vld [vmem:[#allocation8 + $0x148] sm:$0xf]
    %v803 = vld [vmem:[#allocation8 + $0x14c] sm:$0xf]
    %v804 = vld [vmem:[#allocation8 + $0x150] sm:$0xf]
    %v805 = vld [vmem:[#allocation8 + $0x154] sm:$0xf]
    %v806 = vld [vmem:[#allocation8 + $0x158] sm:$0xf]
    %v807 = vld [vmem:[#allocation8 + $0x15c] sm:$0xf]
    %v808 = vld [vmem:[#allocation8 + $0x160] sm:$0xf]
    %v809 = vld [vmem:[#allocation8 + $0x164] sm:$0xf]
    %v810 = vld [vmem:[#allocation8 + $0x168] sm:$0xf]
    %v811 = vld [vmem:[#allocation8 + $0x16c] sm:$0xf]
    %v812 = vld [vmem:[#allocation8 + $0x170] sm:$0xf]
    %v813 = vld [vmem:[#allocation8 + $0x174] sm:$0xf]
    %v814 = vld [vmem:[#allocation8 + $0x178] sm:$0xf]
    %v815 = vld [vmem:[#allocation8 + $0x17c] sm:$0xf]
    %v816 = vld [vmem:[#allocation8 + $0x180] sm:$0xf]
    %v817 = vld [vmem:[#allocation8 + $0x184] sm:$0xf]
    %v818 = vld [vmem:[#allocation8 + $0x188] sm:$0xf]
    %v819 = vld [vmem:[#allocation8 + $0x18c] sm:$0xf]
    %v820 = vld [vmem:[#allocation8 + $0x190] sm:$0xf]
    %v821 = vld [vmem:[#allocation8 + $0x194] sm:$0xf]
    %v822 = vld [vmem:[#allocation8 + $0x198] sm:$0xf]
    %v823 = vld [vmem:[#allocation8 + $0x19c] sm:$0xf]
    %v824 = vld [vmem:[#allocation8 + $0x1a0] sm:$0xf]
    %v825 = vld [vmem:[#allocation8 + $0x1a4] sm:$0xf]
    %v826 = vld [vmem:[#allocation8 + $0x1a8] sm:$0xf]
    %v827 = vld [vmem:[#allocation8 + $0x1ac] sm:$0xf]
    %v828 = vld [vmem:[#allocation8 + $0x1b0] sm:$0xf]
    %v829 = vld [vmem:[#allocation8 + $0x1b4] sm:$0xf]
    %v830 = vld [vmem:[#allocation8 + $0x1b8] sm:$0xf]
    %v831 = vld [vmem:[#allocation8 + $0x1bc] sm:$0xf]
    %v832 = vld [vmem:[#allocation8 + $0x1c0] sm:$0xf]
    %v833 = vld [vmem:[#allocation8 + $0x1c4] sm:$0xf]
    %v834 = vld [vmem:[#allocation8 + $0x1c8] sm:$0xf]
    %v835 = vld [vmem:[#allocation8 + $0x1cc] sm:$0xf]
    %v836 = vld [vmem:[#allocation8 + $0x1d0] sm:$0xf]
    %v837 = vld [vmem:[#allocation8 + $0x1d4] sm:$0xf]
    %v838 = vld [vmem:[#allocation8 + $0x1d8] sm:$0xf]
    %v839 = vld [vmem:[#allocation8 + $0x1dc] sm:$0xf]
    %v840 = vld [vmem:[#allocation8 + $0x1e0] sm:$0xf]
    %v841 = vld [vmem:[#allocation8 + $0x1e4] sm:$0xf]
    %v842 = vld [vmem:[#allocation8 + $0x1e8] sm:$0xf]
    %v843 = vld [vmem:[#allocation8 + $0x1ec] sm:$0xf]
    %v844 = vld [vmem:[#allocation8 + $0x1f0] sm:$0xf]
    %v845 = vld [vmem:[#allocation8 + $0x1f4] sm:$0xf]
    %v846 = vld [vmem:[#allocation8 + $0x1f8] sm:$0xf]
    %v847 = vld [vmem:[#allocation8 + $0x1fc] sm:$0xf]
    %v976 = vunpack.c.l.b16 %v720
    %v977 = vunpack.c.l.b16 %v721
    %v978 = vunpack.c.l.b16 %v722
    %v979 = vunpack.c.l.b16 %v723
    %v980 = vunpack.c.l.b16 %v724
    %v981 = vunpack.c.l.b16 %v725
    %v982 = vunpack.c.l.b16 %v726
    %v983 = vunpack.c.l.b16 %v727
    %v984 = vunpack.c.l.b16 %v728
    %v985 = vunpack.c.l.b16 %v729
    %v986 = vunpack.c.l.b16 %v730
    %v987 = vunpack.c.l.b16 %v731
    %v988 = vunpack.c.l.b16 %v732
    %v989 = vunpack.c.l.b16 %v733
    %v990 = vunpack.c.l.b16 %v734
    %v991 = vunpack.c.l.b16 %v735
    %v992 = vunpack.c.l.b16 %v736
    %v993 = vunpack.c.l.b16 %v737
    %v994 = vunpack.c.l.b16 %v738
    %v995 = vunpack.c.l.b16 %v739
    %v996 = vunpack.c.l.b16 %v740
    %v997 = vunpack.c.l.b16 %v741
    %v998 = vunpack.c.l.b16 %v742
    %v999 = vunpack.c.l.b16 %v743
    %v1000 = vunpack.c.l.b16 %v744
    %v1001 = vunpack.c.l.b16 %v745
    %v1002 = vunpack.c.l.b16 %v746
    %v1003 = vunpack.c.l.b16 %v747
    %v1004 = vunpack.c.l.b16 %v748
    %v1005 = vunpack.c.l.b16 %v749
    %v1006 = vunpack.c.l.b16 %v750
    %v1007 = vunpack.c.l.b16 %v751
    %v1008 = vunpack.c.l.b16 %v752
    %v1009 = vunpack.c.l.b16 %v753
    %v1010 = vunpack.c.l.b16 %v754
    %v1011 = vunpack.c.l.b16 %v755
    %v1012 = vunpack.c.l.b16 %v756
    %v1013 = vunpack.c.l.b16 %v757
    %v1014 = vunpack.c.l.b16 %v758
    %v1015 = vunpack.c.l.b16 %v759
    %v1016 = vunpack.c.l.b16 %v760
    %v1017 = vunpack.c.l.b16 %v761
    %v1018 = vunpack.c.l.b16 %v762
    %v1019 = vunpack.c.l.b16 %v763
    %v1020 = vunpack.c.l.b16 %v764
    %v1021 = vunpack.c.l.b16 %v765
    %v1022 = vunpack.c.l.b16 %v766
    %v1023 = vunpack.c.l.b16 %v767
    %v1024 = vunpack.c.l.b16 %v768
    %v1025 = vunpack.c.l.b16 %v769
    %v1026 = vunpack.c.l.b16 %v770
    %v1027 = vunpack.c.l.b16 %v771
    %v1028 = vunpack.c.l.b16 %v772
    %v1029 = vunpack.c.l.b16 %v773
    %v1030 = vunpack.c.l.b16 %v774
    %v1031 = vunpack.c.l.b16 %v775
    %v1032 = vunpack.c.l.b16 %v776
    %v1033 = vunpack.c.l.b16 %v777
    %v1034 = vunpack.c.l.b16 %v778
    %v1035 = vunpack.c.l.b16 %v779
    %v1036 = vunpack.c.l.b16 %v780
    %v1037 = vunpack.c.l.b16 %v781
    %v1038 = vunpack.c.l.b16 %v782
    %v1039 = vunpack.c.l.b16 %v783
    %v1040 = vunpack.c.l.b16 %v784
    %v1041 = vunpack.c.l.b16 %v785
    %v1042 = vunpack.c.l.b16 %v786
    %v1043 = vunpack.c.l.b16 %v787
    %v1044 = vunpack.c.l.b16 %v788
    %v1045 = vunpack.c.l.b16 %v789
    %v1046 = vunpack.c.l.b16 %v790
    %v1047 = vunpack.c.l.b16 %v791
    %v1048 = vunpack.c.l.b16 %v792
    %v1049 = vunpack.c.l.b16 %v793
    %v1050 = vunpack.c.l.b16 %v794
    %v1051 = vunpack.c.l.b16 %v795
    %v1052 = vunpack.c.l.b16 %v796
    %v1053 = vunpack.c.l.b16 %v797
    %v1054 = vunpack.c.l.b16 %v798
    %v1055 = vunpack.c.l.b16 %v799
    %v1056 = vunpack.c.l.b16 %v800
    %v1057 = vunpack.c.l.b16 %v801
    %v1058 = vunpack.c.l.b16 %v802
    %v1059 = vunpack.c.l.b16 %v803
    %v1060 = vunpack.c.l.b16 %v804
    %v1061 = vunpack.c.l.b16 %v805
    %v1062 = vunpack.c.l.b16 %v806
    %v1063 = vunpack.c.l.b16 %v807
    %v1064 = vunpack.c.l.b16 %v808
    %v1065 = vunpack.c.l.b16 %v809
    %v1066 = vunpack.c.l.b16 %v810
    %v1067 = vunpack.c.l.b16 %v811
    %v1068 = vunpack.c.l.b16 %v812
    %v1069 = vunpack.c.l.b16 %v813
    %v1070 = vunpack.c.l.b16 %v814
    %v1071 = vunpack.c.l.b16 %v815
    %v1072 = vunpack.c.l.b16 %v816
    %v1073 = vunpack.c.l.b16 %v817
    %v1074 = vunpack.c.l.b16 %v818
    %v1075 = vunpack.c.l.b16 %v819
    %v1076 = vunpack.c.l.b16 %v820
    %v1077 = vunpack.c.l.b16 %v821
    %v1078 = vunpack.c.l.b16 %v822
    %v1079 = vunpack.c.l.b16 %v823
    %v1080 = vunpack.c.l.b16 %v824
    %v1081 = vunpack.c.l.b16 %v825
    %v1082 = vunpack.c.l.b16 %v826
    %v1083 = vunpack.c.l.b16 %v827
    %v1084 = vunpack.c.l.b16 %v828
    %v1085 = vunpack.c.l.b16 %v829
    %v1086 = vunpack.c.l.b16 %v830
    %v1087 = vunpack.c.l.b16 %v831
    %v1088 = vunpack.c.l.b16 %v832
    %v1089 = vunpack.c.l.b16 %v833
    %v1090 = vunpack.c.l.b16 %v834
    %v1091 = vunpack.c.l.b16 %v835
    %v1092 = vunpack.c.l.b16 %v836
    %v1093 = vunpack.c.l.b16 %v837
    %v1094 = vunpack.c.l.b16 %v838
    %v1095 = vunpack.c.l.b16 %v839
    %v1096 = vunpack.c.l.b16 %v840
    %v1097 = vunpack.c.l.b16 %v841
    %v1098 = vunpack.c.l.b16 %v842
    %v1099 = vunpack.c.l.b16 %v843
    %v1100 = vunpack.c.l.b16 %v844
    %v1101 = vunpack.c.l.b16 %v845
    %v1102 = vunpack.c.l.b16 %v846
    %v1103 = vunpack.c.l.b16 %v847
    %v1104 = vpack.c.b16 %v977, %v976
    %v1105 = vpack.c.b16 %v979, %v978
    %v1106 = vpack.c.b16 %v981, %v980
    %v1107 = vpack.c.b16 %v983, %v982
    %v1108 = vpack.c.b16 %v985, %v984
    %v1109 = vpack.c.b16 %v987, %v986
    %v1110 = vpack.c.b16 %v989, %v988
    %v1111 = vpack.c.b16 %v991, %v990
    %v1112 = vpack.c.b16 %v993, %v992
    %v1113 = vpack.c.b16 %v995, %v994
    %v1114 = vpack.c.b16 %v997, %v996
    %v1115 = vpack.c.b16 %v999, %v998
    %v1116 = vpack.c.b16 %v1001, %v1000
    %v1117 = vpack.c.b16 %v1003, %v1002
    %v1118 = vpack.c.b16 %v1005, %v1004
    %v1119 = vpack.c.b16 %v1007, %v1006
    %v1120 = vpack.c.b16 %v1009, %v1008
    %v1121 = vpack.c.b16 %v1011, %v1010
    %v1122 = vpack.c.b16 %v1013, %v1012
    %v1123 = vpack.c.b16 %v1015, %v1014
    %v1124 = vpack.c.b16 %v1017, %v1016
    %v1125 = vpack.c.b16 %v1019, %v1018
    %v1126 = vpack.c.b16 %v1021, %v1020
    %v1127 = vpack.c.b16 %v1023, %v1022
    %v1128 = vpack.c.b16 %v1025, %v1024
    %v1129 = vpack.c.b16 %v1027, %v1026
    %v1130 = vpack.c.b16 %v1029, %v1028
    %v1131 = vpack.c.b16 %v1031, %v1030
    %v1132 = vpack.c.b16 %v1033, %v1032
    %v1133 = vpack.c.b16 %v1035, %v1034
    %v1134 = vpack.c.b16 %v1037, %v1036
    %v1135 = vpack.c.b16 %v1039, %v1038
    %v1136 = vpack.c.b16 %v1041, %v1040
    %v1137 = vpack.c.b16 %v1043, %v1042
    %v1138 = vpack.c.b16 %v1045, %v1044
    %v1139 = vpack.c.b16 %v1047, %v1046
    %v1140 = vpack.c.b16 %v1049, %v1048
    %v1141 = vpack.c.b16 %v1051, %v1050
    %v1142 = vpack.c.b16 %v1053, %v1052
    %v1143 = vpack.c.b16 %v1055, %v1054
    %v1144 = vpack.c.b16 %v1057, %v1056
    %v1145 = vpack.c.b16 %v1059, %v1058
    %v1146 = vpack.c.b16 %v1061, %v1060
    %v1147 = vpack.c.b16 %v1063, %v1062
    %v1148 = vpack.c.b16 %v1065, %v1064
    %v1149 = vpack.c.b16 %v1067, %v1066
    %v1150 = vpack.c.b16 %v1069, %v1068
    %v1151 = vpack.c.b16 %v1071, %v1070
    %v1152 = vpack.c.b16 %v1073, %v1072
    %v1153 = vpack.c.b16 %v1075, %v1074
    %v1154 = vpack.c.b16 %v1077, %v1076
    %v1155 = vpack.c.b16 %v1079, %v1078
    %v1156 = vpack.c.b16 %v1081, %v1080
    %v1157 = vpack.c.b16 %v1083, %v1082
    %v1158 = vpack.c.b16 %v1085, %v1084
    %v1159 = vpack.c.b16 %v1087, %v1086
    %v1160 = vpack.c.b16 %v1089, %v1088
    %v1161 = vpack.c.b16 %v1091, %v1090
    %v1162 = vpack.c.b16 %v1093, %v1092
    %v1163 = vpack.c.b16 %v1095, %v1094
    %v1164 = vpack.c.b16 %v1097, %v1096
    %v1165 = vpack.c.b16 %v1099, %v1098
    %v1166 = vpack.c.b16 %v1101, %v1100
    %v1167 = vpack.c.b16 %v1103, %v1102
    %1232 = vmatprep.subr.bf16.mxu0 0
    %1233 = vmatpush1.bf16.msra.mxu0 %v1104
    %1234 = vmatprep.subr.bf16.mxu0 0
    %1235 = vmatpush1.bf16.msra.mxu0 %v1105
    %1236 = vmatprep.subr.bf16.mxu0 0
    %1237 = vmatpush1.bf16.msra.mxu0 %v1106
    %1238 = vmatprep.subr.bf16.mxu0 0
    %1239 = vmatpush1.bf16.msra.mxu0 %v1107
    %1240 = vmatprep.subr.bf16.mxu0 0
    %1241 = vmatpush1.bf16.msra.mxu0 %v1108
    %1242 = vmatprep.subr.bf16.mxu0 0
    %1243 = vmatpush1.bf16.msra.mxu0 %v1109
    %1244 = vmatprep.subr.bf16.mxu0 0
    %1245 = vmatpush1.bf16.msra.mxu0 %v1110
    %1246 = vmatprep.subr.bf16.mxu0 0
    %1247 = vmatpush1.bf16.msra.mxu0 %v1111
    %1248 = vmatprep.subr.bf16.mxu0 0
    %1249 = vmatpush1.bf16.msra.mxu0 %v1112
    %1250 = vmatprep.subr.bf16.mxu0 0
    %1251 = vmatpush1.bf16.msra.mxu0 %v1113
    %1252 = vmatprep.subr.bf16.mxu0 0
    %1253 = vmatpush1.bf16.msra.mxu0 %v1114
    %1254 = vmatprep.subr.bf16.mxu0 0
    %1255 = vmatpush1.bf16.msra.mxu0 %v1115
    %1256 = vmatprep.subr.bf16.mxu0 0
    %1257 = vmatpush1.bf16.msra.mxu0 %v1116
    %1258 = vmatprep.subr.bf16.mxu0 0
    %1259 = vmatpush1.bf16.msra.mxu0 %v1117
    %1260 = vmatprep.subr.bf16.mxu0 0
    %1261 = vmatpush1.bf16.msra.mxu0 %v1118
    %1262 = vmatprep.subr.bf16.mxu0 0
    %1263 = vmatpush1.bf16.msra.mxu0 %v1119
    %1264 = vmatprep.mubr.bf16.mxu0 %v713
    %1265 = vmatmul.mubr.bf16.gmra.mrb[0].mxu0 %v712
    %v1266 = vpop.f32.mrb[0].mxu0
    %v1267 = vadd.f32 0.0, %v1266
    %v1268 = vpop.f32.mrb[0].mxu0
    %v1269 = vpop.f32.mrb[0].mxu0
    %v1270 = vpop.f32.mrb[0].mxu0
    %1271 = vdwg.mxu0
    %1272 = vmatprep.subr.bf16.mxu0 0
    %1273 = vmatpush1.bf16.msra.mxu0 %v1120
    %1274 = vmatprep.subr.bf16.mxu0 0
    %1275 = vmatpush1.bf16.msra.mxu0 %v1121
    %1276 = vmatprep.subr.bf16.mxu0 0
    %1277 = vmatpush1.bf16.msra.mxu0 %v1122
    %1278 = vmatprep.subr.bf16.mxu0 0
    %1279 = vmatpush1.bf16.msra.mxu0 %v1123
    %1280 = vmatprep.subr.bf16.mxu0 0
    %1281 = vmatpush1.bf16.msra.mxu0 %v1124
    %1282 = vmatprep.subr.bf16.mxu0 0
    %1283 = vmatpush1.bf16.msra.mxu0 %v1125
    %1284 = vmatprep.subr.bf16.mxu0 0
    %1285 = vmatpush1.bf16.msra.mxu0 %v1126
    %1286 = vmatprep.subr.bf16.mxu0 0
    %1287 = vmatpush1.bf16.msra.mxu0 %v1127
    %1288 = vmatprep.subr.bf16.mxu0 0
    %1289 = vmatpush1.bf16.msra.mxu0 %v1128
    %1290 = vmatprep.subr.bf16.mxu0 0
    %1291 = vmatpush1.bf16.msra.mxu0 %v1129
    %1292 = vmatprep.subr.bf16.mxu0 0
    %1293 = vmatpush1.bf16.msra.mxu0 %v1130
    %1294 = vmatprep.subr.bf16.mxu0 0
    %1295 = vmatpush1.bf16.msra.mxu0 %v1131
    %1296 = vmatprep.subr.bf16.mxu0 0
    %1297 = vmatpush1.bf16.msra.mxu0 %v1132
    %1298 = vmatprep.subr.bf16.mxu0 0
    %1299 = vmatpush1.bf16.msra.mxu0 %v1133
    %1300 = vmatprep.subr.bf16.mxu0 0
    %1301 = vmatpush1.bf16.msra.mxu0 %v1134
    %1302 = vmatprep.subr.bf16.mxu0 0
    %1303 = vmatpush1.bf16.msra.mxu0 %v1135
    %1304 = vmatprep.mubr.bf16.mxu0 %v715
    %1305 = vmatmul.mubr.bf16.gmra.mrb[0].mxu0 %v714
    %v1306 = vpop.f32.mrb[0].mxu0
    %v1307 = vadd.f32 %v1267, %v1306
    %v1308 = vpop.f32.mrb[0].mxu0
    %v1309 = vpop.f32.mrb[0].mxu0
    %v1310 = vpop.f32.mrb[0].mxu0
    %1311 = vdwg.mxu0
    %1312 = vmatprep.subr.bf16.mxu0 0
    %1313 = vmatpush1.bf16.msra.mxu0 %v1136
    %1314 = vmatprep.subr.bf16.mxu0 0
    %1315 = vmatpush1.bf16.msra.mxu0 %v1137
    %1316 = vmatprep.subr.bf16.mxu0 0
    %1317 = vmatpush1.bf16.msra.mxu0 %v1138
    %1318 = vmatprep.subr.bf16.mxu0 0
    %1319 = vmatpush1.bf16.msra.mxu0 %v1139
    %1320 = vmatprep.subr.bf16.mxu0 0
    %1321 = vmatpush1.bf16.msra.mxu0 %v1140
    %1322 = vmatprep.subr.bf16.mxu0 0
    %1323 = vmatpush1.bf16.msra.mxu0 %v1141
    %1324 = vmatprep.subr.bf16.mxu0 0
    %1325 = vmatpush1.bf16.msra.mxu0 %v1142
    %1326 = vmatprep.subr.bf16.mxu0 0
    %1327 = vmatpush1.bf16.msra.mxu0 %v1143
    %1328 = vmatprep.subr.bf16.mxu0 0
    %1329 = vmatpush1.bf16.msra.mxu0 %v1144
    %1330 = vmatprep.subr.bf16.mxu0 0
    %1331 = vmatpush1.bf16.msra.mxu0 %v1145
    %1332 = vmatprep.subr.bf16.mxu0 0
    %1333 = vmatpush1.bf16.msra.mxu0 %v1146
    %1334 = vmatprep.subr.bf16.mxu0 0
    %1335 = vmatpush1.bf16.msra.mxu0 %v1147
    %1336 = vmatprep.subr.bf16.mxu0 0
    %1337 = vmatpush1.bf16.msra.mxu0 %v1148
    %1338 = vmatprep.subr.bf16.mxu0 0
    %1339 = vmatpush1.bf16.msra.mxu0 %v1149
    %1340 = vmatprep.subr.bf16.mxu0 0
    %1341 = vmatpush1.bf16.msra.mxu0 %v1150
    %1342 = vmatprep.subr.bf16.mxu0 0
    %1343 = vmatpush1.bf16.msra.mxu0 %v1151
    %1344 = vmatprep.mubr.bf16.mxu0 %v717
    %1345 = vmatmul.mubr.bf16.gmra.mrb[0].mxu0 %v716
    %v1346 = vpop.f32.mrb[0].mxu0
    %v1347 = vadd.f32 %v1307, %v1346
    %v1348 = vpop.f32.mrb[0].mxu0
    %v1349 = vpop.f32.mrb[0].mxu0
    %v1350 = vpop.f32.mrb[0].mxu0
    %1351 = vdwg.mxu0
    %1352 = vmatprep.subr.bf16.mxu0 0
    %1353 = vmatpush1.bf16.msra.mxu0 %v1152
    %1354 = vmatprep.subr.bf16.mxu0 0
    %1355 = vmatpush1.bf16.msra.mxu0 %v1153
    %1356 = vmatprep.subr.bf16.mxu0 0
    %1357 = vmatpush1.bf16.msra.mxu0 %v1154
    %1358 = vmatprep.subr.bf16.mxu0 0
    %1359 = vmatpush1.bf16.msra.mxu0 %v1155
    %1360 = vmatprep.subr.bf16.mxu0 0
    %1361 = vmatpush1.bf16.msra.mxu0 %v1156
    %1362 = vmatprep.subr.bf16.mxu0 0
    %1363 = vmatpush1.bf16.msra.mxu0 %v1157
    %1364 = vmatprep.subr.bf16.mxu0 0
    %1365 = vmatpush1.bf16.msra.mxu0 %v1158
    %1366 = vmatprep.subr.bf16.mxu0 0
    %1367 = vmatpush1.bf16.msra.mxu0 %v1159
    %1368 = vmatprep.subr.bf16.mxu0 0
    %1369 = vmatpush1.bf16.msra.mxu0 %v1160
    %1370 = vmatprep.subr.bf16.mxu0 0
    %1371 = vmatpush1.bf16.msra.mxu0 %v1161
    %1372 = vmatprep.subr.bf16.mxu0 0
    %1373 = vmatpush1.bf16.msra.mxu0 %v1162
    %1374 = vmatprep.subr.bf16.mxu0 0
    %1375 = vmatpush1.bf16.msra.mxu0 %v1163
    %1376 = vmatprep.subr.bf16.mxu0 0
    %1377 = vmatpush1.bf16.msra.mxu0 %v1164
    %1378 = vmatprep.subr.bf16.mxu0 0
    %1379 = vmatpush1.bf16.msra.mxu0 %v1165
    %1380 = vmatprep.subr.bf16.mxu0 0
    %1381 = vmatpush1.bf16.msra.mxu0 %v1166
    %1382 = vmatprep.subr.bf16.mxu0 0
    %1383 = vmatpush1.bf16.msra.mxu0 %v1167
    %1384 = vmatprep.mubr.bf16.mxu0 %v719
    %1385 = vmatmul.mubr.bf16.gmra.mrb[0].mxu0 %v718
    %v1386 = vpop.f32.mrb[0].mxu0
    %v1387 = vadd.f32 %v1347, %v1386
    %v1388 = vpop.f32.mrb[0].mxu0
    %v1389 = vpop.f32.mrb[0].mxu0
    %v1390 = vpop.f32.mrb[0].mxu0
    %1391 = vdwg.mxu0
    %v1392 = vadd.f32 %v112, %v1387
    %v1393 = vld [vmem:[%s4] sm:$0x1]
    %v1395 = vlaneseq
    %v1396 = vshrl.u32 %v1395, 7
    %v1397 = vsub.s32 0, %v1396
    %v1398 = vrot.slane %v1393, %v1397
    %v1400 = vadd.f32 %v1392, %v1398
    %v1401 = vpack.c.bf16 %v1400, %v1400
    %v1402 = vld [vmem:[#allocation10] sm:$0xff]
    %v1403 = vld [vmem:[#allocation10 + $0x8] sm:$0xff]
    %v1404 = vld [vmem:[#allocation10 + $0x10] sm:$0xff]
    %v1405 = vld [vmem:[#allocation10 + $0x18] sm:$0xff]
    %v1406 = vld [vmem:[#allocation10 + $0x20] sm:$0xff]
    %v1407 = vld [vmem:[#allocation10 + $0x28] sm:$0xff]
    %v1408 = vld [vmem:[#allocation10 + $0x30] sm:$0xff]
    %v1409 = vld [vmem:[#allocation10 + $0x38] sm:$0xff]
    %v1410 = vld [vmem:[#allocation10 + $0x40] sm:$0xff]
    %v1411 = vld [vmem:[#allocation10 + $0x48] sm:$0xff]
    %v1412 = vld [vmem:[#allocation10 + $0x50] sm:$0xff]
    %v1413 = vld [vmem:[#allocation10 + $0x58] sm:$0xff]
    %v1414 = vld [vmem:[#allocation10 + $0x60] sm:$0xff]
    %v1415 = vld [vmem:[#allocation10 + $0x68] sm:$0xff]
    %v1416 = vld [vmem:[#allocation10 + $0x70] sm:$0xff]
    %v1417 = vld [vmem:[#allocation10 + $0x78] sm:$0xff]
    %v1418 = vld [vmem:[#allocation10 + $0x80] sm:$0xff]
    %v1419 = vld [vmem:[#allocation10 + $0x88] sm:$0xff]
    %v1420 = vld [vmem:[#allocation10 + $0x90] sm:$0xff]
    %v1421 = vld [vmem:[#allocation10 + $0x98] sm:$0xff]
    %v1422 = vld [vmem:[#allocation10 + $0xa0] sm:$0xff]
    %v1423 = vld [vmem:[#allocation10 + $0xa8] sm:$0xff]
    %v1424 = vld [vmem:[#allocation10 + $0xb0] sm:$0xff]
    %v1425 = vld [vmem:[#allocation10 + $0xb8] sm:$0xff]
    %v1426 = vld [vmem:[#allocation10 + $0xc0] sm:$0xff]
    %v1427 = vld [vmem:[#allocation10 + $0xc8] sm:$0xff]
    %v1428 = vld [vmem:[#allocation10 + $0xd0] sm:$0xff]
    %v1429 = vld [vmem:[#allocation10 + $0xd8] sm:$0xff]
    %v1430 = vld [vmem:[#allocation10 + $0xe0] sm:$0xff]
    %v1431 = vld [vmem:[#allocation10 + $0xe8] sm:$0xff]
    %v1432 = vld [vmem:[#allocation10 + $0xf0] sm:$0xff]
    %v1433 = vld [vmem:[#allocation10 + $0xf8] sm:$0xff]
    %v1434 = vld [vmem:[#allocation10 + $0x100] sm:$0xff]
    %v1435 = vld [vmem:[#allocation10 + $0x108] sm:$0xff]
    %v1436 = vld [vmem:[#allocation10 + $0x110] sm:$0xff]
    %v1437 = vld [vmem:[#allocation10 + $0x118] sm:$0xff]
    %v1438 = vld [vmem:[#allocation10 + $0x120] sm:$0xff]
    %v1439 = vld [vmem:[#allocation10 + $0x128] sm:$0xff]
    %v1440 = vld [vmem:[#allocation10 + $0x130] sm:$0xff]
    %v1441 = vld [vmem:[#allocation10 + $0x138] sm:$0xff]
    %v1442 = vld [vmem:[#allocation10 + $0x140] sm:$0xff]
    %v1443 = vld [vmem:[#allocation10 + $0x148] sm:$0xff]
    %v1444 = vld [vmem:[#allocation10 + $0x150] sm:$0xff]
    %v1445 = vld [vmem:[#allocation10 + $0x158] sm:$0xff]
    %v1446 = vld [vmem:[#allocation10 + $0x160] sm:$0xff]
    %v1447 = vld [vmem:[#allocation10 + $0x168] sm:$0xff]
    %v1448 = vld [vmem:[#allocation10 + $0x170] sm:$0xff]
    %v1449 = vld [vmem:[#allocation10 + $0x178] sm:$0xff]
    %v1450 = vld [vmem:[#allocation10 + $0x180] sm:$0xff]
    %v1451 = vld [vmem:[#allocation10 + $0x188] sm:$0xff]
    %v1452 = vld [vmem:[#allocation10 + $0x190] sm:$0xff]
    %v1453 = vld [vmem:[#allocation10 + $0x198] sm:$0xff]
    %v1454 = vld [vmem:[#allocation10 + $0x1a0] sm:$0xff]
    %v1455 = vld [vmem:[#allocation10 + $0x1a8] sm:$0xff]
    %v1456 = vld [vmem:[#allocation10 + $0x1b0] sm:$0xff]
    %v1457 = vld [vmem:[#allocation10 + $0x1b8] sm:$0xff]
    %v1458 = vld [vmem:[#allocation10 + $0x1c0] sm:$0xff]
    %v1459 = vld [vmem:[#allocation10 + $0x1c8] sm:$0xff]
    %v1460 = vld [vmem:[#allocation10 + $0x1d0] sm:$0xff]
    %v1461 = vld [vmem:[#allocation10 + $0x1d8] sm:$0xff]
    %v1462 = vld [vmem:[#allocation10 + $0x1e0] sm:$0xff]
    %v1463 = vld [vmem:[#allocation10 + $0x1e8] sm:$0xff]
    %v1464 = vld [vmem:[#allocation10 + $0x1f0] sm:$0xff]
    %v1465 = vld [vmem:[#allocation10 + $0x1f8] sm:$0xff]
    %v1466 = vld [vmem:[%s6] sm:$0xff]
    %v1468 = vlaneseq
    %v1469 = vshrl.u32 %v1468, 7
    %v1470 = vsub.s32 0, %v1469
    %v1471 = vrot.slane %v1466, %v1470
    %v1472 = vlaneseq
    %v1473 = vshrl.u32 %v1472, 7
    %v1474 = vsub.s32 1, %v1473
    %v1475 = vrot.slane %v1466, %v1474
    %v1476 = vlaneseq
    %v1477 = vshrl.u32 %v1476, 7
    %v1478 = vsub.s32 2, %v1477
    %v1479 = vrot.slane %v1466, %v1478
    %v1480 = vlaneseq
    %v1481 = vshrl.u32 %v1480, 7
    %v1482 = vsub.s32 3, %v1481
    %v1483 = vrot.slane %v1466, %v1482
    %v1484 = vlaneseq
    %v1485 = vshrl.u32 %v1484, 7
    %v1486 = vsub.s32 4, %v1485
    %v1487 = vrot.slane %v1466, %v1486
    %v1488 = vlaneseq
    %v1489 = vshrl.u32 %v1488, 7
    %v1490 = vsub.s32 5, %v1489
    %v1491 = vrot.slane %v1466, %v1490
    %v1492 = vlaneseq
    %v1493 = vshrl.u32 %v1492, 7
    %v1494 = vsub.s32 6, %v1493
    %v1495 = vrot.slane %v1466, %v1494
    %v1496 = vlaneseq
    %v1497 = vshrl.u32 %v1496, 7
    %v1498 = vsub.s32 7, %v1497
    %v1499 = vrot.slane %v1466, %v1498
    %v1572 = vunpack.c.l.b16 %v1402
    %v1573 = vunpack.c.h.b16 %v1402
    %v1574 = vunpack.c.l.b16 %v1403
    %v1575 = vunpack.c.h.b16 %v1403
    %v1576 = vunpack.c.l.b16 %v1404
    %v1577 = vunpack.c.h.b16 %v1404
    %v1578 = vunpack.c.l.b16 %v1405
    %v1579 = vunpack.c.h.b16 %v1405
    %v1580 = vunpack.c.l.b16 %v1406
    %v1581 = vunpack.c.h.b16 %v1406
    %v1582 = vunpack.c.l.b16 %v1407
    %v1583 = vunpack.c.h.b16 %v1407
    %v1584 = vunpack.c.l.b16 %v1408
    %v1585 = vunpack.c.h.b16 %v1408
    %v1586 = vunpack.c.l.b16 %v1409
    %v1587 = vunpack.c.h.b16 %v1409
    %v1588 = vunpack.c.l.b16 %v1410
    %v1589 = vunpack.c.h.b16 %v1410
    %v1590 = vunpack.c.l.b16 %v1411
    %v1591 = vunpack.c.h.b16 %v1411
    %v1592 = vunpack.c.l.b16 %v1412
    %v1593 = vunpack.c.h.b16 %v1412
    %v1594 = vunpack.c.l.b16 %v1413
    %v1595 = vunpack.c.h.b16 %v1413
    %v1596 = vunpack.c.l.b16 %v1414
    %v1597 = vunpack.c.h.b16 %v1414
    %v1598 = vunpack.c.l.b16 %v1415
    %v1599 = vunpack.c.h.b16 %v1415
    %v1600 = vunpack.c.l.b16 %v1416
    %v1601 = vunpack.c.h.b16 %v1416
    %v1602 = vunpack.c.l.b16 %v1417
    %v1603 = vunpack.c.h.b16 %v1417
    %v1604 = vunpack.c.l.b16 %v1418
    %v1605 = vunpack.c.h.b16 %v1418
    %v1606 = vunpack.c.l.b16 %v1419
    %v1607 = vunpack.c.h.b16 %v1419
    %v1608 = vunpack.c.l.b16 %v1420
    %v1609 = vunpack.c.h.b16 %v1420
    %v1610 = vunpack.c.l.b16 %v1421
    %v1611 = vunpack.c.h.b16 %v1421
    %v1612 = vunpack.c.l.b16 %v1422
    %v1613 = vunpack.c.h.b16 %v1422
    %v1614 = vunpack.c.l.b16 %v1423
    %v1615 = vunpack.c.h.b16 %v1423
    %v1616 = vunpack.c.l.b16 %v1424
    %v1617 = vunpack.c.h.b16 %v1424
    %v1618 = vunpack.c.l.b16 %v1425
    %v1619 = vunpack.c.h.b16 %v1425
    %v1620 = vunpack.c.l.b16 %v1426
    %v1621 = vunpack.c.h.b16 %v1426
    %v1622 = vunpack.c.l.b16 %v1427
    %v1623 = vunpack.c.h.b16 %v1427
    %v1624 = vunpack.c.l.b16 %v1428
    %v1625 = vunpack.c.h.b16 %v1428
    %v1626 = vunpack.c.l.b16 %v1429
    %v1627 = vunpack.c.h.b16 %v1429
    %v1628 = vunpack.c.l.b16 %v1430
    %v1629 = vunpack.c.h.b16 %v1430
    %v1630 = vunpack.c.l.b16 %v1431
    %v1631 = vunpack.c.h.b16 %v1431
    %v1632 = vunpack.c.l.b16 %v1432
    %v1633 = vunpack.c.h.b16 %v1432
    %v1634 = vunpack.c.l.b16 %v1433
    %v1635 = vunpack.c.h.b16 %v1433
    %v1636 = vunpack.c.l.b16 %v1434
    %v1637 = vunpack.c.h.b16 %v1434
    %v1638 = vunpack.c.l.b16 %v1435
    %v1639 = vunpack.c.h.b16 %v1435
    %v1640 = vunpack.c.l.b16 %v1436
    %v1641 = vunpack.c.h.b16 %v1436
    %v1642 = vunpack.c.l.b16 %v1437
    %v1643 = vunpack.c.h.b16 %v1437
    %v1644 = vunpack.c.l.b16 %v1438
    %v1645 = vunpack.c.h.b16 %v1438
    %v1646 = vunpack.c.l.b16 %v1439
    %v1647 = vunpack.c.h.b16 %v1439
    %v1648 = vunpack.c.l.b16 %v1440
    %v1649 = vunpack.c.h.b16 %v1440
    %v1650 = vunpack.c.l.b16 %v1441
    %v1651 = vunpack.c.h.b16 %v1441
    %v1652 = vunpack.c.l.b16 %v1442
    %v1653 = vunpack.c.h.b16 %v1442
    %v1654 = vunpack.c.l.b16 %v1443
    %v1655 = vunpack.c.h.b16 %v1443
    %v1656 = vunpack.c.l.b16 %v1444
    %v1657 = vunpack.c.h.b16 %v1444
    %v1658 = vunpack.c.l.b16 %v1445
    %v1659 = vunpack.c.h.b16 %v1445
    %v1660 = vunpack.c.l.b16 %v1446
    %v1661 = vunpack.c.h.b16 %v1446
    %v1662 = vunpack.c.l.b16 %v1447
    %v1663 = vunpack.c.h.b16 %v1447
    %v1664 = vunpack.c.l.b16 %v1448
    %v1665 = vunpack.c.h.b16 %v1448
    %v1666 = vunpack.c.l.b16 %v1449
    %v1667 = vunpack.c.h.b16 %v1449
    %v1668 = vunpack.c.l.b16 %v1450
    %v1669 = vunpack.c.h.b16 %v1450
    %v1670 = vunpack.c.l.b16 %v1451
    %v1671 = vunpack.c.h.b16 %v1451
    %v1672 = vunpack.c.l.b16 %v1452
    %v1673 = vunpack.c.h.b16 %v1452
    %v1674 = vunpack.c.l.b16 %v1453
    %v1675 = vunpack.c.h.b16 %v1453
    %v1676 = vunpack.c.l.b16 %v1454
    %v1677 = vunpack.c.h.b16 %v1454
    %v1678 = vunpack.c.l.b16 %v1455
    %v1679 = vunpack.c.h.b16 %v1455
    %v1680 = vunpack.c.l.b16 %v1456
    %v1681 = vunpack.c.h.b16 %v1456
    %v1682 = vunpack.c.l.b16 %v1457
    %v1683 = vunpack.c.h.b16 %v1457
    %v1684 = vunpack.c.l.b16 %v1458
    %v1685 = vunpack.c.h.b16 %v1458
    %v1686 = vunpack.c.l.b16 %v1459
    %v1687 = vunpack.c.h.b16 %v1459
    %v1688 = vunpack.c.l.b16 %v1460
    %v1689 = vunpack.c.h.b16 %v1460
    %v1690 = vunpack.c.l.b16 %v1461
    %v1691 = vunpack.c.h.b16 %v1461
    %v1692 = vunpack.c.l.b16 %v1462
    %v1693 = vunpack.c.h.b16 %v1462
    %v1694 = vunpack.c.l.b16 %v1463
    %v1695 = vunpack.c.h.b16 %v1463
    %v1696 = vunpack.c.l.b16 %v1464
    %v1697 = vunpack.c.h.b16 %v1464
    %v1698 = vunpack.c.l.b16 %v1465
    %v1699 = vunpack.c.h.b16 %v1465
    %v1700 = vpack.c.b16 %v1580, %v1572
    %v1701 = vpack.c.b16 %v1581, %v1573
    %v1702 = vpack.c.b16 %v1582, %v1574
    %v1703 = vpack.c.b16 %v1583, %v1575
    %v1704 = vpack.c.b16 %v1584, %v1576
    %v1705 = vpack.c.b16 %v1585, %v1577
    %v1706 = vpack.c.b16 %v1586, %v1578
    %v1707 = vpack.c.b16 %v1587, %v1579
    %v1708 = vpack.c.b16 %v1596, %v1588
    %v1709 = vpack.c.b16 %v1597, %v1589
    %v1710 = vpack.c.b16 %v1598, %v1590
    %v1711 = vpack.c.b16 %v1599, %v1591
    %v1712 = vpack.c.b16 %v1600, %v1592
    %v1713 = vpack.c.b16 %v1601, %v1593
    %v1714 = vpack.c.b16 %v1602, %v1594
    %v1715 = vpack.c.b16 %v1603, %v1595
    %v1716 = vpack.c.b16 %v1612, %v1604
    %v1717 = vpack.c.b16 %v1613, %v1605
    %v1718 = vpack.c.b16 %v1614, %v1606
    %v1719 = vpack.c.b16 %v1615, %v1607
    %v1720 = vpack.c.b16 %v1616, %v1608
    %v1721 = vpack.c.b16 %v1617, %v1609
    %v1722 = vpack.c.b16 %v1618, %v1610
    %v1723 = vpack.c.b16 %v1619, %v1611
    %v1724 = vpack.c.b16 %v1628, %v1620
    %v1725 = vpack.c.b16 %v1629, %v1621
    %v1726 = vpack.c.b16 %v1630, %v1622
    %v1727 = vpack.c.b16 %v1631, %v1623
    %v1728 = vpack.c.b16 %v1632, %v1624
    %v1729 = vpack.c.b16 %v1633, %v1625
    %v1730 = vpack.c.b16 %v1634, %v1626
    %v1731 = vpack.c.b16 %v1635, %v1627
    %v1732 = vpack.c.b16 %v1644, %v1636
    %v1733 = vpack.c.b16 %v1645, %v1637
    %v1734 = vpack.c.b16 %v1646, %v1638
    %v1735 = vpack.c.b16 %v1647, %v1639
    %v1736 = vpack.c.b16 %v1648, %v1640
    %v1737 = vpack.c.b16 %v1649, %v1641
    %v1738 = vpack.c.b16 %v1650, %v1642
    %v1739 = vpack.c.b16 %v1651, %v1643
    %v1740 = vpack.c.b16 %v1660, %v1652
    %v1741 = vpack.c.b16 %v1661, %v1653
    %v1742 = vpack.c.b16 %v1662, %v1654
    %v1743 = vpack.c.b16 %v1663, %v1655
    %v1744 = vpack.c.b16 %v1664, %v1656
    %v1745 = vpack.c.b16 %v1665, %v1657
    %v1746 = vpack.c.b16 %v1666, %v1658
    %v1747 = vpack.c.b16 %v1667, %v1659
    %v1748 = vpack.c.b16 %v1676, %v1668
    %v1749 = vpack.c.b16 %v1677, %v1669
    %v1750 = vpack.c.b16 %v1678, %v1670
    %v1751 = vpack.c.b16 %v1679, %v1671
    %v1752 = vpack.c.b16 %v1680, %v1672
    %v1753 = vpack.c.b16 %v1681, %v1673
    %v1754 = vpack.c.b16 %v1682, %v1674
    %v1755 = vpack.c.b16 %v1683, %v1675
    %v1756 = vpack.c.b16 %v1692, %v1684
    %v1757 = vpack.c.b16 %v1693, %v1685
    %v1758 = vpack.c.b16 %v1694, %v1686
    %v1759 = vpack.c.b16 %v1695, %v1687
    %v1760 = vpack.c.b16 %v1696, %v1688
    %v1761 = vpack.c.b16 %v1697, %v1689
    %v1762 = vpack.c.b16 %v1698, %v1690
    %v1763 = vpack.c.b16 %v1699, %v1691
    %1828 = vmatprep.subr.bf16.mxu0 %v1701
    %1829 = vmatpush1.bf16.msra.mxu0 %v1700
    %1830 = vmatprep.subr.bf16.mxu0 %v1709
    %1831 = vmatpush1.bf16.msra.mxu0 %v1708
    %1832 = vmatprep.subr.bf16.mxu0 %v1717
    %1833 = vmatpush1.bf16.msra.mxu0 %v1716
    %1834 = vmatprep.subr.bf16.mxu0 %v1725
    %1835 = vmatpush1.bf16.msra.mxu0 %v1724
    %1836 = vmatprep.subr.bf16.mxu0 %v1733
    %1837 = vmatpush1.bf16.msra.mxu0 %v1732
    %1838 = vmatprep.subr.bf16.mxu0 %v1741
    %1839 = vmatpush1.bf16.msra.mxu0 %v1740
    %1840 = vmatprep.subr.bf16.mxu0 %v1749
    %1841 = vmatpush1.bf16.msra.mxu0 %v1748
    %1842 = vmatprep.subr.bf16.mxu0 %v1757
    %1843 = vmatpush1.bf16.msra.mxu0 %v1756
    %1844 = vmatprep.subr.bf16.mxu0 0
    %1845 = vmatpush1.bf16.msra.mxu0 0
    %1846 = vmatprep.subr.bf16.mxu0 0
    %1847 = vmatpush1.bf16.msra.mxu0 0
    %1848 = vmatprep.subr.bf16.mxu0 0
    %1849 = vmatpush1.bf16.msra.mxu0 0
    %1850 = vmatprep.subr.bf16.mxu0 0
    %1851 = vmatpush1.bf16.msra.mxu0 0
    %1852 = vmatprep.subr.bf16.mxu0 0
    %1853 = vmatpush1.bf16.msra.mxu0 0
    %1854 = vmatprep.subr.bf16.mxu0 0
    %1855 = vmatpush1.bf16.msra.mxu0 0
    %1856 = vmatprep.subr.bf16.mxu0 0
    %1857 = vmatpush1.bf16.msra.mxu0 0
    %1858 = vmatprep.subr.bf16.mxu0 0
    %1859 = vmatpush1.bf16.msra.mxu0 0
    %1860 = vmatprep.mubr.bf16.mxu0 0
    %1861 = vmatmul.mubr.bf16.gmra.mrb[0].mxu0 %v1401
    %v1862 = vpop.f32.mrb[0].mxu0
    %v1863 = vadd.f32 %v1471, %v1862
    %v1864 = vpop.f32.mrb[0].mxu0
    %v1865 = vadd.f32 %v1475, %v1864
    %v1866 = vpop.f32.mrb[0].mxu0
    %v1867 = vpop.f32.mrb[0].mxu0
    %1868 = vdwg.mxu0
    %1869 = vmatprep.subr.bf16.mxu0 %v1703
    %1870 = vmatpush1.bf16.msra.mxu0 %v1702
    %1871 = vmatprep.subr.bf16.mxu0 %v1711
    %1872 = vmatpush1.bf16.msra.mxu0 %v1710
    %1873 = vmatprep.subr.bf16.mxu0 %v1719
    %1874 = vmatpush1.bf16.msra.mxu0 %v1718
    %1875 = vmatprep.subr.bf16.mxu0 %v1727
    %1876 = vmatpush1.bf16.msra.mxu0 %v1726
    %1877 = vmatprep.subr.bf16.mxu0 %v1735
    %1878 = vmatpush1.bf16.msra.mxu0 %v1734
    %1879 = vmatprep.subr.bf16.mxu0 %v1743
    %1880 = vmatpush1.bf16.msra.mxu0 %v1742
    %1881 = vmatprep.subr.bf16.mxu0 %v1751
    %1882 = vmatpush1.bf16.msra.mxu0 %v1750
    %1883 = vmatprep.subr.bf16.mxu0 %v1759
    %1884 = vmatpush1.bf16.msra.mxu0 %v1758
    %1885 = vmatprep.subr.bf16.mxu0 0
    %1886 = vmatpush1.bf16.msra.mxu0 0
    %1887 = vmatprep.subr.bf16.mxu0 0
    %1888 = vmatpush1.bf16.msra.mxu0 0
    %1889 = vmatprep.subr.bf16.mxu0 0
    %1890 = vmatpush1.bf16.msra.mxu0 0
    %1891 = vmatprep.subr.bf16.mxu0 0
    %1892 = vmatpush1.bf16.msra.mxu0 0
    %1893 = vmatprep.subr.bf16.mxu0 0
    %1894 = vmatpush1.bf16.msra.mxu0 0
    %1895 = vmatprep.subr.bf16.mxu0 0
    %1896 = vmatpush1.bf16.msra.mxu0 0
    %1897 = vmatprep.subr.bf16.mxu0 0
    %1898 = vmatpush1.bf16.msra.mxu0 0
    %1899 = vmatprep.subr.bf16.mxu0 0
    %1900 = vmatpush1.bf16.msra.mxu0 0
    %1901 = vmatprep.mubr.bf16.mxu0 0
    %1902 = vmatmul.mubr.bf16.gmra.mrb[0].mxu0 %v1401
    %v1903 = vpop.f32.mrb[0].mxu0
    %v1904 = vadd.f32 %v1479, %v1903
    %v1905 = vpop.f32.mrb[0].mxu0
    %v1906 = vadd.f32 %v1483, %v1905
    %v1907 = vpop.f32.mrb[0].mxu0
    %v1908 = vpop.f32.mrb[0].mxu0
    %1909 = vdwg.mxu0
    %1910 = vmatprep.subr.bf16.mxu0 %v1705
    %1911 = vmatpush1.bf16.msra.mxu0 %v1704
    %1912 = vmatprep.subr.bf16.mxu0 %v1713
    %1913 = vmatpush1.bf16.msra.mxu0 %v1712
    %1914 = vmatprep.subr.bf16.mxu0 %v1721
    %1915 = vmatpush1.bf16.msra.mxu0 %v1720
    %1916 = vmatprep.subr.bf16.mxu0 %v1729
    %1917 = vmatpush1.bf16.msra.mxu0 %v1728
    %1918 = vmatprep.subr.bf16.mxu0 %v1737
    %1919 = vmatpush1.bf16.msra.mxu0 %v1736
    %1920 = vmatprep.subr.bf16.mxu0 %v1745
    %1921 = vmatpush1.bf16.msra.mxu0 %v1744
    %1922 = vmatprep.subr.bf16.mxu0 %v1753
    %1923 = vmatpush1.bf16.msra.mxu0 %v1752
    %1924 = vmatprep.subr.bf16.mxu0 %v1761
    %1925 = vmatpush1.bf16.msra.mxu0 %v1760
    %1926 = vmatprep.subr.bf16.mxu0 0
    %1927 = vmatpush1.bf16.msra.mxu0 0
    %1928 = vmatprep.subr.bf16.mxu0 0
    %1929 = vmatpush1.bf16.msra.mxu0 0
    %1930 = vmatprep.subr.bf16.mxu0 0
    %1931 = vmatpush1.bf16.msra.mxu0 0
    %1932 = vmatprep.subr.bf16.mxu0 0
    %1933 = vmatpush1.bf16.msra.mxu0 0
    %1934 = vmatprep.subr.bf16.mxu0 0
    %1935 = vmatpush1.bf16.msra.mxu0 0
    %1936 = vmatprep.subr.bf16.mxu0 0
    %1937 = vmatpush1.bf16.msra.mxu0 0
    %1938 = vmatprep.subr.bf16.mxu0 0
    %1939 = vmatpush1.bf16.msra.mxu0 0
    %1940 = vmatprep.subr.bf16.mxu0 0
    %1941 = vmatpush1.bf16.msra.mxu0 0
    %1942 = vmatprep.mubr.bf16.mxu0 0
    %1943 = vmatmul.mubr.bf16.gmra.mrb[0].mxu0 %v1401
    %v1944 = vpop.f32.mrb[0].mxu0
    %v1945 = vadd.f32 %v1487, %v1944
    %v1946 = vpop.f32.mrb[0].mxu0
    %v1947 = vadd.f32 %v1491, %v1946
    %v1948 = vpop.f32.mrb[0].mxu0
    %v1949 = vpop.f32.mrb[0].mxu0
    %1950 = vdwg.mxu0
    %1951 = vmatprep.subr.bf16.mxu0 %v1707
    %1952 = vmatpush1.bf16.msra.mxu0 %v1706
    %1953 = vmatprep.subr.bf16.mxu0 %v1715
    %1954 = vmatpush1.bf16.msra.mxu0 %v1714
    %1955 = vmatprep.subr.bf16.mxu0 %v1723
    %1956 = vmatpush1.bf16.msra.mxu0 %v1722
    %1957 = vmatprep.subr.bf16.mxu0 %v1731
    %1958 = vmatpush1.bf16.msra.mxu0 %v1730
    %1959 = vmatprep.subr.bf16.mxu0 %v1739
    %1960 = vmatpush1.bf16.msra.mxu0 %v1738
    %1961 = vmatprep.subr.bf16.mxu0 %v1747
    %1962 = vmatpush1.bf16.msra.mxu0 %v1746
    %1963 = vmatprep.subr.bf16.mxu0 %v1755
    %1964 = vmatpush1.bf16.msra.mxu0 %v1754
    %1965 = vmatprep.subr.bf16.mxu0 %v1763
    %1966 = vmatpush1.bf16.msra.mxu0 %v1762
    %1967 = vmatprep.subr.bf16.mxu0 0
    %1968 = vmatpush1.bf16.msra.mxu0 0
    %1969 = vmatprep.subr.bf16.mxu0 0
    %1970 = vmatpush1.bf16.msra.mxu0 0
    %1971 = vmatprep.subr.bf16.mxu0 0
    %1972 = vmatpush1.bf16.msra.mxu0 0
    %1973 = vmatprep.subr.bf16.mxu0 0
    %1974 = vmatpush1.bf16.msra.mxu0 0
    %1975 = vmatprep.subr.bf16.mxu0 0
    %1976 = vmatpush1.bf16.msra.mxu0 0
    %1977 = vmatprep.subr.bf16.mxu0 0
    %1978 = vmatpush1.bf16.msra.mxu0 0
    %1979 = vmatprep.subr.bf16.mxu0 0
    %1980 = vmatpush1.bf16.msra.mxu0 0
    %1981 = vmatprep.subr.bf16.mxu0 0
    %1982 = vmatpush1.bf16.msra.mxu0 0
    %1983 = vmatprep.mubr.bf16.mxu0 0
    %1984 = vmatmul.mubr.bf16.gmra.mrb[0].mxu0 %v1401
    %v1985 = vpop.f32.mrb[0].mxu0
    %v1986 = vadd.f32 %v1495, %v1985
    %v1987 = vpop.f32.mrb[0].mxu0
    %v1988 = vadd.f32 %v1499, %v1987
    %v1989 = vpop.f32.mrb[0].mxu0
    %v1990 = vpop.f32.mrb[0].mxu0
    %1991 = vdwg.mxu0
    %v1992 = vmax.f32 %v1863, 0.0
    %v1993 = vmax.f32 %v1865, 0.0
    %v1994 = vmax.f32 %v1904, 0.0
    %v1995 = vmax.f32 %v1906, 0.0
    %v1996 = vmax.f32 %v1945, 0.0
    %v1997 = vmax.f32 %v1947, 0.0
    %v1998 = vmax.f32 %v1986, 0.0
    %v1999 = vmax.f32 %v1988, 0.0
    %v2000 = vpack.c.bf16 %v1992, %v1992
    %v2001 = vpack.c.bf16 %v1993, %v1993
    %v2002 = vpack.c.bf16 %v1994, %v1994
    %v2003 = vpack.c.bf16 %v1995, %v1995
    %v2004 = vpack.c.bf16 %v1996, %v1996
    %v2005 = vpack.c.bf16 %v1997, %v1997
    %v2006 = vpack.c.bf16 %v1998, %v1998
    %v2007 = vpack.c.bf16 %v1999, %v1999
    %v2008 = vld [vmem:[#allocation11] sm:$0xf]
    %v2009 = vld [vmem:[#allocation11 + $0x4] sm:$0xf]
    %v2010 = vld [vmem:[#allocation11 + $0x8] sm:$0xf]
    %v2011 = vld [vmem:[#allocation11 + $0xc] sm:$0xf]
    %v2012 = vld [vmem:[#allocation11 + $0x10] sm:$0xf]
    %v2013 = vld [vmem:[#allocation11 + $0x14] sm:$0xf]
    %v2014 = vld [vmem:[#allocation11 + $0x18] sm:$0xf]
    %v2015 = vld [vmem:[#allocation11 + $0x1c] sm:$0xf]
    %v2016 = vld [vmem:[#allocation11 + $0x20] sm:$0xf]
    %v2017 = vld [vmem:[#allocation11 + $0x24] sm:$0xf]
    %v2018 = vld [vmem:[#allocation11 + $0x28] sm:$0xf]
    %v2019 = vld [vmem:[#allocation11 + $0x2c] sm:$0xf]
    %v2020 = vld [vmem:[#allocation11 + $0x30] sm:$0xf]
    %v2021 = vld [vmem:[#allocation11 + $0x34] sm:$0xf]
    %v2022 = vld [vmem:[#allocation11 + $0x38] sm:$0xf]
    %v2023 = vld [vmem:[#allocation11 + $0x3c] sm:$0xf]
    %v2024 = vld [vmem:[#allocation11 + $0x40] sm:$0xf]
    %v2025 = vld [vmem:[#allocation11 + $0x44] sm:$0xf]
    %v2026 = vld [vmem:[#allocation11 + $0x48] sm:$0xf]
    %v2027 = vld [vmem:[#allocation11 + $0x4c] sm:$0xf]
    %v2028 = vld [vmem:[#allocation11 + $0x50] sm:$0xf]
    %v2029 = vld [vmem:[#allocation11 + $0x54] sm:$0xf]
    %v2030 = vld [vmem:[#allocation11 + $0x58] sm:$0xf]
    %v2031 = vld [vmem:[#allocation11 + $0x5c] sm:$0xf]
    %v2032 = vld [vmem:[#allocation11 + $0x60] sm:$0xf]
    %v2033 = vld [vmem:[#allocation11 + $0x64] sm:$0xf]
    %v2034 = vld [vmem:[#allocation11 + $0x68] sm:$0xf]
    %v2035 = vld [vmem:[#allocation11 + $0x6c] sm:$0xf]
    %v2036 = vld [vmem:[#allocation11 + $0x70] sm:$0xf]
    %v2037 = vld [vmem:[#allocation11 + $0x74] sm:$0xf]
    %v2038 = vld [vmem:[#allocation11 + $0x78] sm:$0xf]
    %v2039 = vld [vmem:[#allocation11 + $0x7c] sm:$0xf]
    %v2040 = vld [vmem:[#allocation11 + $0x80] sm:$0xf]
    %v2041 = vld [vmem:[#allocation11 + $0x84] sm:$0xf]
    %v2042 = vld [vmem:[#allocation11 + $0x88] sm:$0xf]
    %v2043 = vld [vmem:[#allocation11 + $0x8c] sm:$0xf]
    %v2044 = vld [vmem:[#allocation11 + $0x90] sm:$0xf]
    %v2045 = vld [vmem:[#allocation11 + $0x94] sm:$0xf]
    %v2046 = vld [vmem:[#allocation11 + $0x98] sm:$0xf]
    %v2047 = vld [vmem:[#allocation11 + $0x9c] sm:$0xf]
    %v2048 = vld [vmem:[#allocation11 + $0xa0] sm:$0xf]
    %v2049 = vld [vmem:[#allocation11 + $0xa4] sm:$0xf]
    %v2050 = vld [vmem:[#allocation11 + $0xa8] sm:$0xf]
    %v2051 = vld [vmem:[#allocation11 + $0xac] sm:$0xf]
    %v2052 = vld [vmem:[#allocation11 + $0xb0] sm:$0xf]
    %v2053 = vld [vmem:[#allocation11 + $0xb4] sm:$0xf]
    %v2054 = vld [vmem:[#allocation11 + $0xb8] sm:$0xf]
    %v2055 = vld [vmem:[#allocation11 + $0xbc] sm:$0xf]
    %v2056 = vld [vmem:[#allocation11 + $0xc0] sm:$0xf]
    %v2057 = vld [vmem:[#allocation11 + $0xc4] sm:$0xf]
    %v2058 = vld [vmem:[#allocation11 + $0xc8] sm:$0xf]
    %v2059 = vld [vmem:[#allocation11 + $0xcc] sm:$0xf]
    %v2060 = vld [vmem:[#allocation11 + $0xd0] sm:$0xf]
    %v2061 = vld [vmem:[#allocation11 + $0xd4] sm:$0xf]
    %v2062 = vld [vmem:[#allocation11 + $0xd8] sm:$0xf]
    %v2063 = vld [vmem:[#allocation11 + $0xdc] sm:$0xf]
    %v2064 = vld [vmem:[#allocation11 + $0xe0] sm:$0xf]
    %v2065 = vld [vmem:[#allocation11 + $0xe4] sm:$0xf]
    %v2066 = vld [vmem:[#allocation11 + $0xe8] sm:$0xf]
    %v2067 = vld [vmem:[#allocation11 + $0xec] sm:$0xf]
    %v2068 = vld [vmem:[#allocation11 + $0xf0] sm:$0xf]
    %v2069 = vld [vmem:[#allocation11 + $0xf4] sm:$0xf]
    %v2070 = vld [vmem:[#allocation11 + $0xf8] sm:$0xf]
    %v2071 = vld [vmem:[#allocation11 + $0xfc] sm:$0xf]
    %v2072 = vld [vmem:[#allocation11 + $0x100] sm:$0xf]
    %v2073 = vld [vmem:[#allocation11 + $0x104] sm:$0xf]
    %v2074 = vld [vmem:[#allocation11 + $0x108] sm:$0xf]
    %v2075 = vld [vmem:[#allocation11 + $0x10c] sm:$0xf]
    %v2076 = vld [vmem:[#allocation11 + $0x110] sm:$0xf]
    %v2077 = vld [vmem:[#allocation11 + $0x114] sm:$0xf]
    %v2078 = vld [vmem:[#allocation11 + $0x118] sm:$0xf]
    %v2079 = vld [vmem:[#allocation11 + $0x11c] sm:$0xf]
    %v2080 = vld [vmem:[#allocation11 + $0x120] sm:$0xf]
    %v2081 = vld [vmem:[#allocation11 + $0x124] sm:$0xf]
    %v2082 = vld [vmem:[#allocation11 + $0x128] sm:$0xf]
    %v2083 = vld [vmem:[#allocation11 + $0x12c] sm:$0xf]
    %v2084 = vld [vmem:[#allocation11 + $0x130] sm:$0xf]
    %v2085 = vld [vmem:[#allocation11 + $0x134] sm:$0xf]
    %v2086 = vld [vmem:[#allocation11 + $0x138] sm:$0xf]
    %v2087 = vld [vmem:[#allocation11 + $0x13c] sm:$0xf]
    %v2088 = vld [vmem:[#allocation11 + $0x140] sm:$0xf]
    %v2089 = vld [vmem:[#allocation11 + $0x144] sm:$0xf]
    %v2090 = vld [vmem:[#allocation11 + $0x148] sm:$0xf]
    %v2091 = vld [vmem:[#allocation11 + $0x14c] sm:$0xf]
    %v2092 = vld [vmem:[#allocation11 + $0x150] sm:$0xf]
    %v2093 = vld [vmem:[#allocation11 + $0x154] sm:$0xf]
    %v2094 = vld [vmem:[#allocation11 + $0x158] sm:$0xf]
    %v2095 = vld [vmem:[#allocation11 + $0x15c] sm:$0xf]
    %v2096 = vld [vmem:[#allocation11 + $0x160] sm:$0xf]
    %v2097 = vld [vmem:[#allocation11 + $0x164] sm:$0xf]
    %v2098 = vld [vmem:[#allocation11 + $0x168] sm:$0xf]
    %v2099 = vld [vmem:[#allocation11 + $0x16c] sm:$0xf]
    %v2100 = vld [vmem:[#allocation11 + $0x170] sm:$0xf]
    %v2101 = vld [vmem:[#allocation11 + $0x174] sm:$0xf]
    %v2102 = vld [vmem:[#allocation11 + $0x178] sm:$0xf]
    %v2103 = vld [vmem:[#allocation11 + $0x17c] sm:$0xf]
    %v2104 = vld [vmem:[#allocation11 + $0x180] sm:$0xf]
    %v2105 = vld [vmem:[#allocation11 + $0x184] sm:$0xf]
    %v2106 = vld [vmem:[#allocation11 + $0x188] sm:$0xf]
    %v2107 = vld [vmem:[#allocation11 + $0x18c] sm:$0xf]
    %v2108 = vld [vmem:[#allocation11 + $0x190] sm:$0xf]
    %v2109 = vld [vmem:[#allocation11 + $0x194] sm:$0xf]
    %v2110 = vld [vmem:[#allocation11 + $0x198] sm:$0xf]
    %v2111 = vld [vmem:[#allocation11 + $0x19c] sm:$0xf]
    %v2112 = vld [vmem:[#allocation11 + $0x1a0] sm:$0xf]
    %v2113 = vld [vmem:[#allocation11 + $0x1a4] sm:$0xf]
    %v2114 = vld [vmem:[#allocation11 + $0x1a8] sm:$0xf]
    %v2115 = vld [vmem:[#allocation11 + $0x1ac] sm:$0xf]
    %v2116 = vld [vmem:[#allocation11 + $0x1b0] sm:$0xf]
    %v2117 = vld [vmem:[#allocation11 + $0x1b4] sm:$0xf]
    %v2118 = vld [vmem:[#allocation11 + $0x1b8] sm:$0xf]
    %v2119 = vld [vmem:[#allocation11 + $0x1bc] sm:$0xf]
    %v2120 = vld [vmem:[#allocation11 + $0x1c0] sm:$0xf]
    %v2121 = vld [vmem:[#allocation11 + $0x1c4] sm:$0xf]
    %v2122 = vld [vmem:[#allocation11 + $0x1c8] sm:$0xf]
    %v2123 = vld [vmem:[#allocation11 + $0x1cc] sm:$0xf]
    %v2124 = vld [vmem:[#allocation11 + $0x1d0] sm:$0xf]
    %v2125 = vld [vmem:[#allocation11 + $0x1d4] sm:$0xf]
    %v2126 = vld [vmem:[#allocation11 + $0x1d8] sm:$0xf]
    %v2127 = vld [vmem:[#allocation11 + $0x1dc] sm:$0xf]
    %v2128 = vld [vmem:[#allocation11 + $0x1e0] sm:$0xf]
    %v2129 = vld [vmem:[#allocation11 + $0x1e4] sm:$0xf]
    %v2130 = vld [vmem:[#allocation11 + $0x1e8] sm:$0xf]
    %v2131 = vld [vmem:[#allocation11 + $0x1ec] sm:$0xf]
    %v2132 = vld [vmem:[#allocation11 + $0x1f0] sm:$0xf]
    %v2133 = vld [vmem:[#allocation11 + $0x1f4] sm:$0xf]
    %v2134 = vld [vmem:[#allocation11 + $0x1f8] sm:$0xf]
    %v2135 = vld [vmem:[#allocation11 + $0x1fc] sm:$0xf]
    %v2264 = vunpack.c.l.b16 %v2008
    %v2265 = vunpack.c.l.b16 %v2009
    %v2266 = vunpack.c.l.b16 %v2010
    %v2267 = vunpack.c.l.b16 %v2011
    %v2268 = vunpack.c.l.b16 %v2012
    %v2269 = vunpack.c.l.b16 %v2013
    %v2270 = vunpack.c.l.b16 %v2014
    %v2271 = vunpack.c.l.b16 %v2015
    %v2272 = vunpack.c.l.b16 %v2016
    %v2273 = vunpack.c.l.b16 %v2017
    %v2274 = vunpack.c.l.b16 %v2018
    %v2275 = vunpack.c.l.b16 %v2019
    %v2276 = vunpack.c.l.b16 %v2020
    %v2277 = vunpack.c.l.b16 %v2021
    %v2278 = vunpack.c.l.b16 %v2022
    %v2279 = vunpack.c.l.b16 %v2023
    %v2280 = vunpack.c.l.b16 %v2024
    %v2281 = vunpack.c.l.b16 %v2025
    %v2282 = vunpack.c.l.b16 %v2026
    %v2283 = vunpack.c.l.b16 %v2027
    %v2284 = vunpack.c.l.b16 %v2028
    %v2285 = vunpack.c.l.b16 %v2029
    %v2286 = vunpack.c.l.b16 %v2030
    %v2287 = vunpack.c.l.b16 %v2031
    %v2288 = vunpack.c.l.b16 %v2032
    %v2289 = vunpack.c.l.b16 %v2033
    %v2290 = vunpack.c.l.b16 %v2034
    %v2291 = vunpack.c.l.b16 %v2035
    %v2292 = vunpack.c.l.b16 %v2036
    %v2293 = vunpack.c.l.b16 %v2037
    %v2294 = vunpack.c.l.b16 %v2038
    %v2295 = vunpack.c.l.b16 %v2039
    %v2296 = vunpack.c.l.b16 %v2040
    %v2297 = vunpack.c.l.b16 %v2041
    %v2298 = vunpack.c.l.b16 %v2042
    %v2299 = vunpack.c.l.b16 %v2043
    %v2300 = vunpack.c.l.b16 %v2044
    %v2301 = vunpack.c.l.b16 %v2045
    %v2302 = vunpack.c.l.b16 %v2046
    %v2303 = vunpack.c.l.b16 %v2047
    %v2304 = vunpack.c.l.b16 %v2048
    %v2305 = vunpack.c.l.b16 %v2049
    %v2306 = vunpack.c.l.b16 %v2050
    %v2307 = vunpack.c.l.b16 %v2051
    %v2308 = vunpack.c.l.b16 %v2052
    %v2309 = vunpack.c.l.b16 %v2053
    %v2310 = vunpack.c.l.b16 %v2054
    %v2311 = vunpack.c.l.b16 %v2055
    %v2312 = vunpack.c.l.b16 %v2056
    %v2313 = vunpack.c.l.b16 %v2057
    %v2314 = vunpack.c.l.b16 %v2058
    %v2315 = vunpack.c.l.b16 %v2059
    %v2316 = vunpack.c.l.b16 %v2060
    %v2317 = vunpack.c.l.b16 %v2061
    %v2318 = vunpack.c.l.b16 %v2062
    %v2319 = vunpack.c.l.b16 %v2063
    %v2320 = vunpack.c.l.b16 %v2064
    %v2321 = vunpack.c.l.b16 %v2065
    %v2322 = vunpack.c.l.b16 %v2066
    %v2323 = vunpack.c.l.b16 %v2067
    %v2324 = vunpack.c.l.b16 %v2068
    %v2325 = vunpack.c.l.b16 %v2069
    %v2326 = vunpack.c.l.b16 %v2070
    %v2327 = vunpack.c.l.b16 %v2071
    %v2328 = vunpack.c.l.b16 %v2072
    %v2329 = vunpack.c.l.b16 %v2073
    %v2330 = vunpack.c.l.b16 %v2074
    %v2331 = vunpack.c.l.b16 %v2075
    %v2332 = vunpack.c.l.b16 %v2076
    %v2333 = vunpack.c.l.b16 %v2077
    %v2334 = vunpack.c.l.b16 %v2078
    %v2335 = vunpack.c.l.b16 %v2079
    %v2336 = vunpack.c.l.b16 %v2080
    %v2337 = vunpack.c.l.b16 %v2081
    %v2338 = vunpack.c.l.b16 %v2082
    %v2339 = vunpack.c.l.b16 %v2083
    %v2340 = vunpack.c.l.b16 %v2084
    %v2341 = vunpack.c.l.b16 %v2085
    %v2342 = vunpack.c.l.b16 %v2086
    %v2343 = vunpack.c.l.b16 %v2087
    %v2344 = vunpack.c.l.b16 %v2088
    %v2345 = vunpack.c.l.b16 %v2089
    %v2346 = vunpack.c.l.b16 %v2090
    %v2347 = vunpack.c.l.b16 %v2091
    %v2348 = vunpack.c.l.b16 %v2092
    %v2349 = vunpack.c.l.b16 %v2093
    %v2350 = vunpack.c.l.b16 %v2094
    %v2351 = vunpack.c.l.b16 %v2095
    %v2352 = vunpack.c.l.b16 %v2096
    %v2353 = vunpack.c.l.b16 %v2097
    %v2354 = vunpack.c.l.b16 %v2098
    %v2355 = vunpack.c.l.b16 %v2099
    %v2356 = vunpack.c.l.b16 %v2100
    %v2357 = vunpack.c.l.b16 %v2101
    %v2358 = vunpack.c.l.b16 %v2102
    %v2359 = vunpack.c.l.b16 %v2103
    %v2360 = vunpack.c.l.b16 %v2104
    %v2361 = vunpack.c.l.b16 %v2105
    %v2362 = vunpack.c.l.b16 %v2106
    %v2363 = vunpack.c.l.b16 %v2107
    %v2364 = vunpack.c.l.b16 %v2108
    %v2365 = vunpack.c.l.b16 %v2109
    %v2366 = vunpack.c.l.b16 %v2110
    %v2367 = vunpack.c.l.b16 %v2111
    %v2368 = vunpack.c.l.b16 %v2112
    %v2369 = vunpack.c.l.b16 %v2113
    %v2370 = vunpack.c.l.b16 %v2114
    %v2371 = vunpack.c.l.b16 %v2115
    %v2372 = vunpack.c.l.b16 %v2116
    %v2373 = vunpack.c.l.b16 %v2117
    %v2374 = vunpack.c.l.b16 %v2118
    %v2375 = vunpack.c.l.b16 %v2119
    %v2376 = vunpack.c.l.b16 %v2120
    %v2377 = vunpack.c.l.b16 %v2121
    %v2378 = vunpack.c.l.b16 %v2122
    %v2379 = vunpack.c.l.b16 %v2123
    %v2380 = vunpack.c.l.b16 %v2124
    %v2381 = vunpack.c.l.b16 %v2125
    %v2382 = vunpack.c.l.b16 %v2126
    %v2383 = vunpack.c.l.b16 %v2127
    %v2384 = vunpack.c.l.b16 %v2128
    %v2385 = vunpack.c.l.b16 %v2129
    %v2386 = vunpack.c.l.b16 %v2130
    %v2387 = vunpack.c.l.b16 %v2131
    %v2388 = vunpack.c.l.b16 %v2132
    %v2389 = vunpack.c.l.b16 %v2133
    %v2390 = vunpack.c.l.b16 %v2134
    %v2391 = vunpack.c.l.b16 %v2135
    %v2392 = vpack.c.b16 %v2265, %v2264
    %v2393 = vpack.c.b16 %v2267, %v2266
    %v2394 = vpack.c.b16 %v2269, %v2268
    %v2395 = vpack.c.b16 %v2271, %v2270
    %v2396 = vpack.c.b16 %v2273, %v2272
    %v2397 = vpack.c.b16 %v2275, %v2274
    %v2398 = vpack.c.b16 %v2277, %v2276
    %v2399 = vpack.c.b16 %v2279, %v2278
    %v2400 = vpack.c.b16 %v2281, %v2280
    %v2401 = vpack.c.b16 %v2283, %v2282
    %v2402 = vpack.c.b16 %v2285, %v2284
    %v2403 = vpack.c.b16 %v2287, %v2286
    %v2404 = vpack.c.b16 %v2289, %v2288
    %v2405 = vpack.c.b16 %v2291, %v2290
    %v2406 = vpack.c.b16 %v2293, %v2292
    %v2407 = vpack.c.b16 %v2295, %v2294
    %v2408 = vpack.c.b16 %v2297, %v2296
    %v2409 = vpack.c.b16 %v2299, %v2298
    %v2410 = vpack.c.b16 %v2301, %v2300
    %v2411 = vpack.c.b16 %v2303, %v2302
    %v2412 = vpack.c.b16 %v2305, %v2304
    %v2413 = vpack.c.b16 %v2307, %v2306
    %v2414 = vpack.c.b16 %v2309, %v2308
    %v2415 = vpack.c.b16 %v2311, %v2310
    %v2416 = vpack.c.b16 %v2313, %v2312
    %v2417 = vpack.c.b16 %v2315, %v2314
    %v2418 = vpack.c.b16 %v2317, %v2316
    %v2419 = vpack.c.b16 %v2319, %v2318
    %v2420 = vpack.c.b16 %v2321, %v2320
    %v2421 = vpack.c.b16 %v2323, %v2322
    %v2422 = vpack.c.b16 %v2325, %v2324
    %v2423 = vpack.c.b16 %v2327, %v2326
    %v2424 = vpack.c.b16 %v2329, %v2328
    %v2425 = vpack.c.b16 %v2331, %v2330
    %v2426 = vpack.c.b16 %v2333, %v2332
    %v2427 = vpack.c.b16 %v2335, %v2334
    %v2428 = vpack.c.b16 %v2337, %v2336
    %v2429 = vpack.c.b16 %v2339, %v2338
    %v2430 = vpack.c.b16 %v2341, %v2340
    %v2431 = vpack.c.b16 %v2343, %v2342
    %v2432 = vpack.c.b16 %v2345, %v2344
    %v2433 = vpack.c.b16 %v2347, %v2346
    %v2434 = vpack.c.b16 %v2349, %v2348
    %v2435 = vpack.c.b16 %v2351, %v2350
    %v2436 = vpack.c.b16 %v2353, %v2352
    %v2437 = vpack.c.b16 %v2355, %v2354
    %v2438 = vpack.c.b16 %v2357, %v2356
    %v2439 = vpack.c.b16 %v2359, %v2358
    %v2440 = vpack.c.b16 %v2361, %v2360
    %v2441 = vpack.c.b16 %v2363, %v2362
    %v2442 = vpack.c.b16 %v2365, %v2364
    %v2443 = vpack.c.b16 %v2367, %v2366
    %v2444 = vpack.c.b16 %v2369, %v2368
    %v2445 = vpack.c.b16 %v2371, %v2370
    %v2446 = vpack.c.b16 %v2373, %v2372
    %v2447 = vpack.c.b16 %v2375, %v2374
    %v2448 = vpack.c.b16 %v2377, %v2376
    %v2449 = vpack.c.b16 %v2379, %v2378
    %v2450 = vpack.c.b16 %v2381, %v2380
    %v2451 = vpack.c.b16 %v2383, %v2382
    %v2452 = vpack.c.b16 %v2385, %v2384
    %v2453 = vpack.c.b16 %v2387, %v2386
    %v2454 = vpack.c.b16 %v2389, %v2388
    %v2455 = vpack.c.b16 %v2391, %v2390
    %2520 = vmatprep.subr.bf16.mxu0 0
    %2521 = vmatpush1.bf16.msra.mxu0 %v2392
    %2522 = vmatprep.subr.bf16.mxu0 0
    %2523 = vmatpush1.bf16.msra.mxu0 %v2393
    %2524 = vmatprep.subr.bf16.mxu0 0
    %2525 = vmatpush1.bf16.msra.mxu0 %v2394
    %2526 = vmatprep.subr.bf16.mxu0 0
    %2527 = vmatpush1.bf16.msra.mxu0 %v2395
    %2528 = vmatprep.subr.bf16.mxu0 0
    %2529 = vmatpush1.bf16.msra.mxu0 %v2396
    %2530 = vmatprep.subr.bf16.mxu0 0
    %2531 = vmatpush1.bf16.msra.mxu0 %v2397
    %2532 = vmatprep.subr.bf16.mxu0 0
    %2533 = vmatpush1.bf16.msra.mxu0 %v2398
    %2534 = vmatprep.subr.bf16.mxu0 0
    %2535 = vmatpush1.bf16.msra.mxu0 %v2399
    %2536 = vmatprep.subr.bf16.mxu0 0
    %2537 = vmatpush1.bf16.msra.mxu0 %v2400
    %2538 = vmatprep.subr.bf16.mxu0 0
    %2539 = vmatpush1.bf16.msra.mxu0 %v2401
    %2540 = vmatprep.subr.bf16.mxu0 0
    %2541 = vmatpush1.bf16.msra.mxu0 %v2402
    %2542 = vmatprep.subr.bf16.mxu0 0
    %2543 = vmatpush1.bf16.msra.mxu0 %v2403
    %2544 = vmatprep.subr.bf16.mxu0 0
    %2545 = vmatpush1.bf16.msra.mxu0 %v2404
    %2546 = vmatprep.subr.bf16.mxu0 0
    %2547 = vmatpush1.bf16.msra.mxu0 %v2405
    %2548 = vmatprep.subr.bf16.mxu0 0
    %2549 = vmatpush1.bf16.msra.mxu0 %v2406
    %2550 = vmatprep.subr.bf16.mxu0 0
    %2551 = vmatpush1.bf16.msra.mxu0 %v2407
    %2552 = vmatprep.mubr.bf16.mxu0 %v2001
    %2553 = vmatmul.mubr.bf16.gmra.mrb[0].mxu0 %v2000
    %v2554 = vpop.f32.mrb[0].mxu0
    %v2555 = vadd.f32 0.0, %v2554
    %v2556 = vpop.f32.mrb[0].mxu0
    %v2557 = vpop.f32.mrb[0].mxu0
    %v2558 = vpop.f32.mrb[0].mxu0
    %2559 = vdwg.mxu0
    %2560 = vmatprep.subr.bf16.mxu0 0
    %2561 = vmatpush1.bf16.msra.mxu0 %v2408
    %2562 = vmatprep.subr.bf16.mxu0 0
    %2563 = vmatpush1.bf16.msra.mxu0 %v2409
    %2564 = vmatprep.subr.bf16.mxu0 0
    %2565 = vmatpush1.bf16.msra.mxu0 %v2410
    %2566 = vmatprep.subr.bf16.mxu0 0
    %2567 = vmatpush1.bf16.msra.mxu0 %v2411
    %2568 = vmatprep.subr.bf16.mxu0 0
    %2569 = vmatpush1.bf16.msra.mxu0 %v2412
    %2570 = vmatprep.subr.bf16.mxu0 0
    %2571 = vmatpush1.bf16.msra.mxu0 %v2413
    %2572 = vmatprep.subr.bf16.mxu0 0
    %2573 = vmatpush1.bf16.msra.mxu0 %v2414
    %2574 = vmatprep.subr.bf16.mxu0 0
    %2575 = vmatpush1.bf16.msra.mxu0 %v2415
    %2576 = vmatprep.subr.bf16.mxu0 0
    %2577 = vmatpush1.bf16.msra.mxu0 %v2416
    %2578 = vmatprep.subr.bf16.mxu0 0
    %2579 = vmatpush1.bf16.msra.mxu0 %v2417
    %2580 = vmatprep.subr.bf16.mxu0 0
    %2581 = vmatpush1.bf16.msra.mxu0 %v2418
    %2582 = vmatprep.subr.bf16.mxu0 0
    %2583 = vmatpush1.bf16.msra.mxu0 %v2419
    %2584 = vmatprep.subr.bf16.mxu0 0
    %2585 = vmatpush1.bf16.msra.mxu0 %v2420
    %2586 = vmatprep.subr.bf16.mxu0 0
    %2587 = vmatpush1.bf16.msra.mxu0 %v2421
    %2588 = vmatprep.subr.bf16.mxu0 0
    %2589 = vmatpush1.bf16.msra.mxu0 %v2422
    %2590 = vmatprep.subr.bf16.mxu0 0
    %2591 = vmatpush1.bf16.msra.mxu0 %v2423
    %2592 = vmatprep.mubr.bf16.mxu0 %v2003
    %2593 = vmatmul.mubr.bf16.gmra.mrb[0].mxu0 %v2002
    %v2594 = vpop.f32.mrb[0].mxu0
    %v2595 = vadd.f32 %v2555, %v2594
    %v2596 = vpop.f32.mrb[0].mxu0
    %v2597 = vpop.f32.mrb[0].mxu0
    %v2598 = vpop.f32.mrb[0].mxu0
    %2599 = vdwg.mxu0
    %2600 = vmatprep.subr.bf16.mxu0 0
    %2601 = vmatpush1.bf16.msra.mxu0 %v2424
    %2602 = vmatprep.subr.bf16.mxu0 0
    %2603 = vmatpush1.bf16.msra.mxu0 %v2425
    %2604 = vmatprep.subr.bf16.mxu0 0
    %2605 = vmatpush1.bf16.msra.mxu0 %v2426
    %2606 = vmatprep.subr.bf16.mxu0 0
    %2607 = vmatpush1.bf16.msra.mxu0 %v2427
    %2608 = vmatprep.subr.bf16.mxu0 0
    %2609 = vmatpush1.bf16.msra.mxu0 %v2428
    %2610 = vmatprep.subr.bf16.mxu0 0
    %2611 = vmatpush1.bf16.msra.mxu0 %v2429
    %2612 = vmatprep.subr.bf16.mxu0 0
    %2613 = vmatpush1.bf16.msra.mxu0 %v2430
    %2614 = vmatprep.subr.bf16.mxu0 0
    %2615 = vmatpush1.bf16.msra.mxu0 %v2431
    %2616 = vmatprep.subr.bf16.mxu0 0
    %2617 = vmatpush1.bf16.msra.mxu0 %v2432
    %2618 = vmatprep.subr.bf16.mxu0 0
    %2619 = vmatpush1.bf16.msra.mxu0 %v2433
    %2620 = vmatprep.subr.bf16.mxu0 0
    %2621 = vmatpush1.bf16.msra.mxu0 %v2434
    %2622 = vmatprep.subr.bf16.mxu0 0
    %2623 = vmatpush1.bf16.msra.mxu0 %v2435
    %2624 = vmatprep.subr.bf16.mxu0 0
    %2625 = vmatpush1.bf16.msra.mxu0 %v2436
    %2626 = vmatprep.subr.bf16.mxu0 0
    %2627 = vmatpush1.bf16.msra.mxu0 %v2437
    %2628 = vmatprep.subr.bf16.mxu0 0
    %2629 = vmatpush1.bf16.msra.mxu0 %v2438
    %2630 = vmatprep.subr.bf16.mxu0 0
    %2631 = vmatpush1.bf16.msra.mxu0 %v2439
    %2632 = vmatprep.mubr.bf16.mxu0 %v2005
    %2633 = vmatmul.mubr.bf16.gmra.mrb[0].mxu0 %v2004
    %v2634 = vpop.f32.mrb[0].mxu0
    %v2635 = vadd.f32 %v2595, %v2634
    %v2636 = vpop.f32.mrb[0].mxu0
    %v2637 = vpop.f32.mrb[0].mxu0
    %v2638 = vpop.f32.mrb[0].mxu0
    %2639 = vdwg.mxu0
    %2640 = vmatprep.subr.bf16.mxu0 0
    %2641 = vmatpush1.bf16.msra.mxu0 %v2440
    %2642 = vmatprep.subr.bf16.mxu0 0
    %2643 = vmatpush1.bf16.msra.mxu0 %v2441
    %2644 = vmatprep.subr.bf16.mxu0 0
    %2645 = vmatpush1.bf16.msra.mxu0 %v2442
    %2646 = vmatprep.subr.bf16.mxu0 0
    %2647 = vmatpush1.bf16.msra.mxu0 %v2443
    %2648 = vmatprep.subr.bf16.mxu0 0
    %2649 = vmatpush1.bf16.msra.mxu0 %v2444
    %2650 = vmatprep.subr.bf16.mxu0 0
    %2651 = vmatpush1.bf16.msra.mxu0 %v2445
    %2652 = vmatprep.subr.bf16.mxu0 0
    %2653 = vmatpush1.bf16.msra.mxu0 %v2446
    %2654 = vmatprep.subr.bf16.mxu0 0
    %2655 = vmatpush1.bf16.msra.mxu0 %v2447
    %2656 = vmatprep.subr.bf16.mxu0 0
    %2657 = vmatpush1.bf16.msra.mxu0 %v2448
    %2658 = vmatprep.subr.bf16.mxu0 0
    %2659 = vmatpush1.bf16.msra.mxu0 %v2449
    %2660 = vmatprep.subr.bf16.mxu0 0
    %2661 = vmatpush1.bf16.msra.mxu0 %v2450
    %2662 = vmatprep.subr.bf16.mxu0 0
    %2663 = vmatpush1.bf16.msra.mxu0 %v2451
    %2664 = vmatprep.subr.bf16.mxu0 0
    %2665 = vmatpush1.bf16.msra.mxu0 %v2452
    %2666 = vmatprep.subr.bf16.mxu0 0
    %2667 = vmatpush1.bf16.msra.mxu0 %v2453
    %2668 = vmatprep.subr.bf16.mxu0 0
    %2669 = vmatpush1.bf16.msra.mxu0 %v2454
    %2670 = vmatprep.subr.bf16.mxu0 0
    %2671 = vmatpush1.bf16.msra.mxu0 %v2455
    %2672 = vmatprep.mubr.bf16.mxu0 %v2007
    %2673 = vmatmul.mubr.bf16.gmra.mrb[0].mxu0 %v2006
    %v2674 = vpop.f32.mrb[0].mxu0
    %v2675 = vadd.f32 %v2635, %v2674
    %v2676 = vpop.f32.mrb[0].mxu0
    %v2677 = vpop.f32.mrb[0].mxu0
    %v2678 = vpop.f32.mrb[0].mxu0
    %2679 = vdwg.mxu0
    %v2680 = vadd.f32 %v1400, %v2675
    %v2681 = vld [vmem:[%s8] sm:$0x1]
    %v2683 = vlaneseq
    %v2684 = vshrl.u32 %v2683, 7
    %v2685 = vsub.s32 0, %v2684
    %v2686 = vrot.slane %v2681, %v2685
    %v2688 = vadd.f32 %v2680, %v2686
    %2689 = vst [vmem:[#allocation13] sm:$0xff] %v2688
    // Predicated region
    $region62: #{visual_feature_adapter.1} parent=1 // pred_check
      _
    $region63: #{visual_feature_adapter.1} parent=1 // pred_check_branch
      %2691 = sbr.rel (0) target = $region65
    $region64: #{visual_feature_adapter.1} parent=1 // pred_region
      %s2693 = ssub.s32 128, 128
      %2694 = vsyncadd [#allocation4], %s2693
      %s2696 = sshll.u32 [#allocation13], 4
      %s2697 = int_to_ptr.vmem [resolvable:$true] %s2696
      %2699 = dma.vmem_to_hbm [thread:$0]  %s2697, 128, %s9, [#allocation4]
    $region65: #{visual_feature_adapter.1} parent=1 // pred_fallthru
      _
    // Predicated region
    $region66: #{visual_feature_adapter.1} parent=1 // pred_check
      _
    $region67: #{visual_feature_adapter.1} parent=1 // pred_check_branch
      %2701 = sbr.rel (0) target = $region69
    $region68: #{visual_feature_adapter.1} parent=1 // pred_region
      %2702 = dma.done [#allocation4], 128
    $region69: #{visual_feature_adapter.1} parent=1 // pred_fallthru
      _
    %2703 = vsyncpa [#allocation3], 1
    %2704 = vsyncpa [#allocation6], 1
    %2705 = vsyncpa [#allocation9], 1
    %2706 = vsyncpa [#allocation12], 1
    %2707 = vsyncpa [#allocation4], 1

</llo_original>
